<compile_context>
chip_gen: v7x
topology: tpu7x:2x2x1
jax: 0.10.0
libtpu: 0.0.40
codegen_flags: <defaults>
</compile_context>

<pallas_src>
import math
from functools import partial

import jax
import jax.numpy as jnp
from jax.experimental import pallas as pl
from jax.experimental.pallas import tpu as pltpu


# ----------------------------- shared helpers -----------------------------

def _layer_norm(x, gamma, beta, eps):
    mean = jnp.mean(x, axis=-1, keepdims=True)
    var = jnp.mean((x - mean) ** 2, axis=-1, keepdims=True)
    return (x - mean) * jax.lax.rsqrt(var + eps) * gamma + beta


def _compiler_params():
    vmem_limit = None
    try:
        phys = int(pltpu.get_tpu_info().vmem_capacity_bytes)
        vmem_limit = min(3 * phys // 4, 96 * 1024 * 1024)
    except Exception:
        pass  # fall back to the compiler default scoped-VMEM limit
    return pltpu.CompilerParams(
        dimension_semantics=("parallel", "arbitrary"),
        vmem_limit_bytes=vmem_limit,
    )


def _pick_block_batch(B, S, requested=None):
    """Batch rows per grid step (weight-stream amortization)."""
    if requested is not None:
        assert requested > 0 and B % requested == 0
        return requested
    token_cap = 1024                       # tokens of activation per grid step
    best = 1
    for d in range(1, B + 1):
        if B % d != 0 or d * S > token_cap:
            continue
        # keep >=2 parallel grid steps on larger batches (v7x has 2 TensorCores)
        if B >= 4 and B // d < 2:
            continue
        best = d
    return best


# ----------------------- fused encoder-stack kernel ------------------------

def _encoder_kernel(tok_ref, pos_ref, egb_ref,
                    wqkv_ref, bqkv_ref, wo_ref, w1_ref, b1_ref, w2_ref,
                    dvec_ref, out_ref, attn_sc,
                    *, num_heads, head_dim, bt, seq):
    D = num_heads * head_dim
    T = bt * seq
    layer = pl.program_id(1)

    # ---- layer 0: fuse embedding add + LayerNorm(eps=1e-12) into the carry init
    @pl.when(layer == 0)
    def _():
        x0 = tok_ref[...] + pos_ref[...]                      # (Bt, S, D)
        out_ref[...] = _layer_norm(x0, egb_ref[0:1], egb_ref[1:2], 1e-12)

    x = out_ref[...].reshape(T, D)                            # carried activation (T, D) f32

    # packed per-layer vectors: rows = [bo, ln1_g, ln1_b, ln2_g, ln2_b, b2]
    dv = dvec_ref[0]                                          # (6, D)
    bo, ln1_g, ln1_b = dv[0:1], dv[1:2], dv[2:3]
    ln2_g, ln2_b, b2 = dv[3:4], dv[4:5], dv[5:6]

    # ---- pre-LN multi-head self-attention (mask=None) ----
    h = _layer_norm(x, ln1_g, ln1_b, 1e-5)
    qkv = jnp.dot(h.astype(jnp.bfloat16), wqkv_ref[0],
                  preferred_element_type=jnp.float32) + bqkv_ref[0]   # (T, 3D) f32
    qkv_b = qkv.astype(jnp.bfloat16).reshape(bt, seq, 3 * D)  # cast once, slice bf16

    scale = 1.0 / math.sqrt(head_dim)
    for hi in range(num_heads):                               # static unroll over heads
        lo = hi * head_dim
        qh = qkv_b[:, :, lo:lo + head_dim]                    # (Bt, S, hd) bf16
        kh = qkv_b[:, :, D + lo:D + lo + head_dim]
        vh = qkv_b[:, :, 2 * D + lo:2 * D + lo + head_dim]

        s = jnp.einsum('bqd,bkd->bqk', qh, kh,
                       preferred_element_type=jnp.float32) * scale
        s = s - jnp.max(s, axis=-1, keepdims=True)
        e = jnp.exp(s)
        p = e * pl.reciprocal(jnp.sum(e, axis=-1, keepdims=True), approx=True)

        head_out = jnp.einsum('bqk,bkd->bqd', p.astype(jnp.bfloat16), vh,
                              preferred_element_type=jnp.float32)     # (Bt, S, hd)
        # write the head output at its lane offset; ONE full-K Wo matmul below
        attn_sc[:, lo:lo + head_dim] = head_out.reshape(T, head_dim).astype(jnp.bfloat16)

    x = x + bo + jnp.dot(attn_sc[...], wo_ref[0],
                         preferred_element_type=jnp.float32)          # residual + out proj

    # ---- pre-LN feed-forward (exact erf GELU, matching nn.GELU()) ----
    h2 = _layer_norm(x, ln2_g, ln2_b, 1e-5)
    ff1 = jnp.dot(h2.astype(jnp.bfloat16), w1_ref[0],
                  preferred_element_type=jnp.float32) + b1_ref[0]
    g = 0.5 * ff1 * (1.0 + jax.lax.erf(ff1 * (1.0 / math.sqrt(2.0))))
    ff2 = jnp.dot(g.astype(jnp.bfloat16), w2_ref[0],
                  preferred_element_type=jnp.float32) + b2

    out_ref[...] = (x + ff2).reshape(bt, seq, D)              # carry / final output


def encoder_forward(input_ids, params, num_heads, block_batch=None):
    B, S = input_ids.shape
    D = params["tok_emb"].shape[1]
    L = params["wqkv"].shape[0]
    I = params["w1"].shape[2]
    head_dim = D // num_heads
    Bt = _pick_block_batch(B, S, block_batch)

    tok = params["tok_emb"][input_ids]         # (B, S, D) gather: plain-JAX glue
    pos = params["pos_emb"][:S]                # (S, D)
    egb = jnp.concatenate([params["emb_ln_g"], params["emb_ln_b"]], axis=0)   # (2, D)
    # pack the six D-length per-layer vectors as rows (cheap sublane slices in-kernel)
    dvecs = jnp.concatenate(
        [params["bo"], params["ln1_g"], params["ln1_b"],
         params["ln2_g"], params["ln2_b"], params["b2"]], axis=1)             # (L, 6, D)

    def rep(shape):                            # grid-invariant 2-D operand
        return pl.BlockSpec(shape, lambda b, l: (0, 0))

    def per_layer(shape):                      # per-layer stacked weight/bias
        return pl.BlockSpec((1,) + shape, lambda b, l: (l, 0, 0))

    kernel = partial(_encoder_kernel, num_heads=num_heads, head_dim=head_dim,
                     bt=Bt, seq=S)
    return pl.pallas_call(
        kernel,
        out_shape=jax.ShapeDtypeStruct((B, S, D), jnp.float32),
        grid=(B // Bt, L),
        in_specs=[
            pl.BlockSpec((Bt, S, D), lambda b, l: (b, 0, 0)),   # token embeddings
            rep((S, D)),                                        # position embeddings
            rep((2, D)),                                        # emb LN gamma/beta (packed)
            per_layer((D, 3 * D)),                              # fused Wqkv
            per_layer((1, 3 * D)),                              # bqkv
            per_layer((D, D)),                                  # Wo
            per_layer((D, I)),                                  # W1
            per_layer((1, I)),                                  # b1
            per_layer((I, D)),                                  # W2
            per_layer((6, D)),                                  # packed per-layer vectors
        ],
        # Same block index for every layer of a batch block -> activation stays
        # resident in VMEM across the layer axis (no HBM round trips).
        out_specs=pl.BlockSpec((Bt, S, D), lambda b, l: (b, 0, 0)),
        scratch_shapes=[pltpu.VMEM((Bt * S, D), jnp.bfloat16)],   # attention output
        compiler_params=_compiler_params(),
    )(tok, pos, egb,
      params["wqkv"], params["bqkv"], params["wo"],
      params["w1"], params["b1"], params["w2"], dvecs)


# --------------------------- pure-JAX reference -----------------------------

def encoder_reference(input_ids, params, num_heads, matmul_dtype=jnp.float32):
    """PyTorch-semantics reference. matmul_dtype=bfloat16 mimics the kernel's
    MXU operand precision (f32 accumulation either way)."""
    def mm(a, b):
        return jnp.dot(a.astype(matmul_dtype), b.astype(matmul_dtype),
                       preferred_element_type=jnp.float32)

    S = input_ids.shape[1]
    x = params["tok_emb"][input_ids] + params["pos_emb"][:S][None]
    x = _layer_norm(x, params["emb_ln_g"], params["emb_ln_b"], 1e-12)
    B, _, D = x.shape
    H = num_heads
    hd = D // H
    L = params["wqkv"].shape[0]
    for li in range(L):
        h = _layer_norm(x, params["ln1_g"][li], params["ln1_b"][li], 1e-5)
        qkv = mm(h, params["wqkv"][li]) + params["bqkv"][li]
        q, k, v = qkv[..., :D], qkv[..., D:2 * D], qkv[..., 2 * D:]
        split = lambda t: t.reshape(B, S, H, hd).transpose(0, 2, 1, 3)
        qh, kh, vh = split(q), split(k), split(v)
        s = jnp.einsum('bhqd,bhkd->bhqk',
                       qh.astype(matmul_dtype), kh.astype(matmul_dtype),
                       preferred_element_type=jnp.float32) / math.sqrt(hd)
        p = jax.nn.softmax(s, axis=-1)
        a = jnp.einsum('bhqk,bhkd->bhqd',
                       p.astype(matmul_dtype), vh.astype(matmul_dtype),
                       preferred_element_type=jnp.float32)
        a = a.transpose(0, 2, 1, 3).reshape(B, S, D)
        x = x + mm(a, params["wo"][li]) + params["bo"][li]
        h2 = _layer_norm(x, params["ln2_g"][li], params["ln2_b"][li], 1e-5)
        g = jax.nn.gelu(mm(h2, params["w1"][li]) + params["b1"][li], approximate=False)
        x = x + mm(g, params["w2"][li]) + params["b2"][li]
    return x


# ----------------------------- parameter init ------------------------------

def init_params(key, vocab, max_pos, D, I, num_layers):
    keys = jax.random.split(key, 2 + num_layers)

    def nrm(k, shape):
        return 0.02 * jax.random.normal(k, shape, jnp.float32)

    wqkv, bqkv, wo, bo, w1, b1, w2, b2 = ([] for _ in range(8))
    for li in range(num_layers):
        lk = jax.random.split(keys[2 + li], 12)
        wq, wk, wv = nrm(lk[0], (D, D)), nrm(lk[2], (D, D)), nrm(lk[4], (D, D))
        bq, bk, bv = nrm(lk[1], (1, D)), nrm(lk[3], (1, D)), nrm(lk[5], (1, D))
        wqkv.append(jnp.concatenate([wq, wk, wv], axis=1))
        bqkv.append(jnp.concatenate([bq, bk, bv], axis=1))
        wo.append(nrm(lk[6], (D, D))); bo.append(nrm(lk[7], (1, D)))
        w1.append(nrm(lk[8], (D, I))); b1.append(nrm(lk[9], (1, I)))
        w2.append(nrm(lk[10], (I, D))); b2.append(nrm(lk[11], (1, D)))

    st = lambda xs, dt: jnp.stack(xs).astype(dt)
    return {
        "tok_emb": nrm(keys[0], (vocab, D)),
        "pos_emb": nrm(keys[1], (max_pos, D)),
        "emb_ln_g": jnp.ones((1, D), jnp.float32),
        "emb_ln_b": jnp.zeros((1, D), jnp.float32),
        # matmul weights stored bf16 (MXU-native, half the DMA/VMEM); biases f32
        "wqkv": st(wqkv, jnp.bfloat16), "bqkv": st(bqkv, jnp.float32),
        "wo": st(wo, jnp.bfloat16), "bo": st(bo, jnp.float32),
        "ln1_g": jnp.ones((num_layers, 1, D), jnp.float32),
        "ln1_b": jnp.zeros((num_layers, 1, D), jnp.float32),
        "ln2_g": jnp.ones((num_layers, 1, D), jnp.float32),
        "ln2_b": jnp.zeros((num_layers, 1, D), jnp.float32),
        "w1": st(w1, jnp.bfloat16), "b1": st(b1, jnp.float32),
        "w2": st(w2, jnp.bfloat16), "b2": st(b2, jnp.float32),
    }


# ---------------------------------- main ------------------------------------

if __name__ == "__main__":
    B, S = 2, 8                       # batch, sequence length
    D, H, I = 32, 4, 64               # hidden_size, num_attention_heads, intermediate_size
    VOCAB, MAX_POS, LAYERS = 50, 16, 2

    key = jax.random.PRNGKey(0)
    pkey, ikey = jax.random.split(key)
    params = init_params(pkey, VOCAB, MAX_POS, D, I, LAYERS)
    enc_in = jax.random.randint(ikey, (B, S), 0, VOCAB, dtype=jnp.int32)

    out = jax.block_until_ready(encoder_forward(enc_in, params, H))
    assert out.shape == (B, S, D), out.shape

    # matched-precision reference (bf16 matmul operands, f32 accumulation)
    ref_matched = encoder_reference(enc_in, params, H, matmul_dtype=jnp.bfloat16)
    err_m = float(jnp.max(jnp.abs(out - ref_matched)))
    assert err_m < 5e-3, f"matched-precision max abs err {err_m}"

    # pure-f32 reference (PyTorch semantics); loose tolerance covers bf16 MXU operands
    ref_f32 = encoder_reference(enc_in, params, H, matmul_dtype=jnp.float32)
    err_f = float(jnp.max(jnp.abs(out - ref_f32)))
    assert err_f < 3e-2, f"f32-reference max abs err {err_f}"

    print("KERNEL_OK")
</pallas_src>

<mosaic_0001>
module attributes {stable_mosaic.version = 11 : i64} {
  func.func @_encoder_kernel(%arg0: i32, %arg1: i32, %arg2: memref<2x8x32xf32, #tpu.memory_space<vmem>>, %arg3: memref<8x32xf32, #tpu.memory_space<vmem>>, %arg4: memref<2x32xf32, #tpu.memory_space<vmem>>, %arg5: memref<1x32x96xbf16, #tpu.memory_space<vmem>>, %arg6: memref<1x1x96xf32, #tpu.memory_space<vmem>>, %arg7: memref<1x32x32xbf16, #tpu.memory_space<vmem>>, %arg8: memref<1x32x64xbf16, #tpu.memory_space<vmem>>, %arg9: memref<1x1x64xf32, #tpu.memory_space<vmem>>, %arg10: memref<1x64x32xbf16, #tpu.memory_space<vmem>>, %arg11: memref<1x6x32xf32, #tpu.memory_space<vmem>>, %arg12: memref<2x8x32xf32, #tpu.memory_space<vmem>>, %arg13: memref<16x32xbf16, #tpu.memory_space<vmem>>) attributes {dimension_semantics = [#tpu.dimension_semantics<parallel>, #tpu.dimension_semantics<arbitrary>], iteration_bounds = array<i64: 1, 2>, scalar_prefetch = 0 : i64, scratch_operands = 1 : i64, tpu.core_type = #tpu.core_type<tc>, window_params = [{transform_indices = @transform_0, window_bounds = array<i64: 2, 8, 32>}, {pipeline_mode = #tpu.pipeline_mode<synchronous>, transform_indices = @transform_1, window_bounds = array<i64: 8, 32>}, {pipeline_mode = #tpu.pipeline_mode<synchronous>, transform_indices = @transform_2, window_bounds = array<i64: 2, 32>}, {transform_indices = @transform_3, window_bounds = array<i64: 1, 32, 96>}, {transform_indices = @transform_4, window_bounds = array<i64: 1, 1, 96>}, {transform_indices = @transform_5, window_bounds = array<i64: 1, 32, 32>}, {transform_indices = @transform_6, window_bounds = array<i64: 1, 32, 64>}, {transform_indices = @transform_7, window_bounds = array<i64: 1, 1, 64>}, {transform_indices = @transform_8, window_bounds = array<i64: 1, 64, 32>}, {transform_indices = @transform_9, window_bounds = array<i64: 1, 6, 32>}, {transform_indices = @transform_10, window_bounds = array<i64: 2, 8, 32>}]} {
    %c0_i32 = arith.constant 0 : i32
    %0 = arith.cmpi eq, %arg1, %c0_i32 : i32
    %1 = arith.extui %0 : i1 to i32
    %c0_i32_0 = arith.constant 0 : i32
    %2 = arith.cmpi ne, %1, %c0_i32_0 : i32
    scf.if %2 {
      %c0_70 = arith.constant 0 : index
      %c0_71 = arith.constant 0 : index
      %c0_72 = arith.constant 0 : index
      %183 = vector.load %arg2[%c0_70, %c0_71, %c0_72] : memref<2x8x32xf32, #tpu.memory_space<vmem>>, vector<2x8x32xf32>
      %c0_73 = arith.constant 0 : index
      %c0_74 = arith.constant 0 : index
      %184 = vector.load %arg3[%c0_73, %c0_74] : memref<8x32xf32, #tpu.memory_space<vmem>>, vector<8x32xf32>
      %185 = vector.shape_cast %184 : vector<8x32xf32> to vector<1x8x32xf32>
      %186 = vector.broadcast %185 : vector<1x8x32xf32> to vector<2x8x32xf32>
      %187 = arith.addf %183, %186 : vector<2x8x32xf32>
      %c0_75 = arith.constant 0 : index
      %c0_76 = arith.constant 0 : index
      %188 = vector.load %arg4[%c0_75, %c0_76] : memref<2x32xf32, #tpu.memory_space<vmem>>, vector<1x32xf32>
      %c1 = arith.constant 1 : index
      %c0_77 = arith.constant 0 : index
      %189 = vector.load %arg4[%c1, %c0_77] : memref<2x32xf32, #tpu.memory_space<vmem>>, vector<1x32xf32>
      %cst_78 = arith.constant dense<0.000000e+00> : vector<2x8xf32>
      %190 = vector.multi_reduction <add>, %187, %cst_78 [2] : vector<2x8x32xf32> to vector<2x8xf32>
      %191 = vector.shape_cast %190 : vector<2x8xf32> to vector<2x8x1xf32>
      %cst_79 = arith.constant 3.200000e+01 : f32
      %192 = vector.broadcast %cst_79 : f32 to vector<2x8x1xf32>
      %193 = arith.divf %191, %192 : vector<2x8x1xf32>
      %194 = vector.broadcast %193 : vector<2x8x1xf32> to vector<2x8x32xf32>
      %195 = arith.subf %187, %194 : vector<2x8x32xf32>
      %196 = arith.mulf %195, %195 : vector<2x8x32xf32>
      %cst_80 = arith.constant dense<0.000000e+00> : vector<2x8xf32>
      %197 = vector.multi_reduction <add>, %196, %cst_80 [2] : vector<2x8x32xf32> to vector<2x8xf32>
      %198 = vector.shape_cast %197 : vector<2x8xf32> to vector<2x8x1xf32>
      %cst_81 = arith.constant 3.200000e+01 : f32
      %199 = vector.broadcast %cst_81 : f32 to vector<2x8x1xf32>
      %200 = arith.divf %198, %199 : vector<2x8x1xf32>
      %201 = vector.broadcast %193 : vector<2x8x1xf32> to vector<2x8x32xf32>
      %202 = arith.subf %187, %201 : vector<2x8x32xf32>
      %cst_82 = arith.constant 9.99999996E-13 : f32
      %203 = vector.broadcast %cst_82 : f32 to vector<2x8x1xf32>
      %204 = arith.addf %200, %203 : vector<2x8x1xf32>
      %205 = math.rsqrt %204 : vector<2x8x1xf32>
      %206 = vector.broadcast %205 : vector<2x8x1xf32> to vector<2x8x32xf32>
      %207 = arith.mulf %202, %206 : vector<2x8x32xf32>
      %208 = vector.shape_cast %188 : vector<1x32xf32> to vector<1x1x32xf32>
      %209 = vector.broadcast %208 : vector<1x1x32xf32> to vector<2x8x32xf32>
      %210 = arith.mulf %207, %209 : vector<2x8x32xf32>
      %211 = vector.shape_cast %189 : vector<1x32xf32> to vector<1x1x32xf32>
      %212 = vector.broadcast %211 : vector<1x1x32xf32> to vector<2x8x32xf32>
      %213 = arith.addf %210, %212 : vector<2x8x32xf32>
      %c0_83 = arith.constant 0 : index
      %c0_84 = arith.constant 0 : index
      %c0_85 = arith.constant 0 : index
      %214 = vector.load %arg12[%c0_83, %c0_84, %c0_85] : memref<2x8x32xf32, #tpu.memory_space<vmem>>, vector<2x8x32xf32>
      tpu.vector_store %arg12[%c0_83, %c0_84, %c0_85], %213 {strides = array<i32>} : memref<2x8x32xf32, #tpu.memory_space<vmem>>, vector<2x8x32xf32>,
    } else {
    }
    %c0 = arith.constant 0 : index
    %c0_1 = arith.constant 0 : index
    %c0_2 = arith.constant 0 : index
    %3 = vector.load %arg12[%c0, %c0_1, %c0_2] : memref<2x8x32xf32, #tpu.memory_space<vmem>>, vector<2x8x32xf32>
    %4 = vector.shape_cast %3 : vector<2x8x32xf32> to vector<16x32xf32>
    %c0_3 = arith.constant 0 : index
    %c0_4 = arith.constant 0 : index
    %c0_5 = arith.constant 0 : index
    %5 = vector.load %arg11[%c0_3, %c0_4, %c0_5] : memref<1x6x32xf32, #tpu.memory_space<vmem>>, vector<1x6x32xf32>
    %6 = vector.shape_cast %5 : vector<1x6x32xf32> to vector<6x32xf32>
    %7 = vector.extract_strided_slice %6 {offsets = [0, 0], sizes = [1, 32], strides = [1, 1]} : vector<6x32xf32> to vector<1x32xf32>
    %8 = vector.extract_strided_slice %6 {offsets = [1, 0], sizes = [1, 32], strides = [1, 1]} : vector<6x32xf32> to vector<1x32xf32>
    %9 = vector.extract_strided_slice %6 {offsets = [2, 0], sizes = [1, 32], strides = [1, 1]} : vector<6x32xf32> to vector<1x32xf32>
    %10 = vector.extract_strided_slice %6 {offsets = [3, 0], sizes = [1, 32], strides = [1, 1]} : vector<6x32xf32> to vector<1x32xf32>
    %11 = vector.extract_strided_slice %6 {offsets = [4, 0], sizes = [1, 32], strides = [1, 1]} : vector<6x32xf32> to vector<1x32xf32>
    %12 = vector.extract_strided_slice %6 {offsets = [5, 0], sizes = [1, 32], strides = [1, 1]} : vector<6x32xf32> to vector<1x32xf32>
    %cst = arith.constant dense<0.000000e+00> : vector<16xf32>
    %13 = vector.multi_reduction <add>, %4, %cst [1] : vector<16x32xf32> to vector<16xf32>
    %14 = vector.shape_cast %13 : vector<16xf32> to vector<16x1xf32>
    %cst_6 = arith.constant 3.200000e+01 : f32
    %15 = vector.broadcast %cst_6 : f32 to vector<16x1xf32>
    %16 = arith.divf %14, %15 : vector<16x1xf32>
    %17 = vector.broadcast %16 : vector<16x1xf32> to vector<16x32xf32>
    %18 = arith.subf %4, %17 : vector<16x32xf32>
    %19 = arith.mulf %18, %18 : vector<16x32xf32>
    %cst_7 = arith.constant dense<0.000000e+00> : vector<16xf32>
    %20 = vector.multi_reduction <add>, %19, %cst_7 [1] : vector<16x32xf32> to vector<16xf32>
    %21 = vector.shape_cast %20 : vector<16xf32> to vector<16x1xf32>
    %cst_8 = arith.constant 3.200000e+01 : f32
    %22 = vector.broadcast %cst_8 : f32 to vector<16x1xf32>
    %23 = arith.divf %21, %22 : vector<16x1xf32>
    %24 = vector.broadcast %16 : vector<16x1xf32> to vector<16x32xf32>
    %25 = arith.subf %4, %24 : vector<16x32xf32>
    %cst_9 = arith.constant 9.99999974E-6 : f32
    %26 = vector.broadcast %cst_9 : f32 to vector<16x1xf32>
    %27 = arith.addf %23, %26 : vector<16x1xf32>
    %28 = math.rsqrt %27 : vector<16x1xf32>
    %29 = vector.broadcast %28 : vector<16x1xf32> to vector<16x32xf32>
    %30 = arith.mulf %25, %29 : vector<16x32xf32>
    %31 = vector.broadcast %8 : vector<1x32xf32> to vector<16x32xf32>
    %32 = arith.mulf %30, %31 : vector<16x32xf32>
    %33 = vector.broadcast %9 : vector<1x32xf32> to vector<16x32xf32>
    %34 = arith.addf %32, %33 : vector<16x32xf32>
    %35 = arith.truncf %34 : vector<16x32xf32> to vector<16x32xbf16>
    %c0_10 = arith.constant 0 : index
    %c0_11 = arith.constant 0 : index
    %c0_12 = arith.constant 0 : index
    %36 = vector.load %arg5[%c0_10, %c0_11, %c0_12] : memref<1x32x96xbf16, #tpu.memory_space<vmem>>, vector<1x32x96xbf16>
    %37 = vector.shape_cast %36 : vector<1x32x96xbf16> to vector<32x96xbf16>
    %cst_13 = arith.constant dense<0.000000e+00> : vector<16x96xf32>
    %38 = tpu.matmul %35, %37, %cst_13 {dimension_numbers = #tpu.dot_dimension_numbers<[1], [0], [0], [1], [0, 0, 1, 1], [], []>} : vector<16x32xbf16>, vector<32x96xbf16>, vector<16x96xf32> -> vector<16x96xf32>
    %c0_14 = arith.constant 0 : index
    %c0_15 = arith.constant 0 : index
    %c0_16 = arith.constant 0 : index
    %39 = vector.load %arg6[%c0_14, %c0_15, %c0_16] : memref<1x1x96xf32, #tpu.memory_space<vmem>>, vector<1x1x96xf32>
    %40 = vector.shape_cast %39 : vector<1x1x96xf32> to vector<1x96xf32>
    %41 = vector.broadcast %40 : vector<1x96xf32> to vector<16x96xf32>
    %42 = arith.addf %38, %41 : vector<16x96xf32>
    %43 = arith.truncf %42 : vector<16x96xf32> to vector<16x96xbf16>
    %44 = vector.shape_cast %43 : vector<16x96xbf16> to vector<2x8x96xbf16>
    %45 = vector.extract_strided_slice %44 {offsets = [0, 0, 0], sizes = [2, 8, 8], strides = [1, 1, 1]} : vector<2x8x96xbf16> to vector<2x8x8xbf16>
    %46 = vector.extract_strided_slice %44 {offsets = [0, 0, 32], sizes = [2, 8, 8], strides = [1, 1, 1]} : vector<2x8x96xbf16> to vector<2x8x8xbf16>
    %47 = vector.extract_strided_slice %44 {offsets = [0, 0, 64], sizes = [2, 8, 8], strides = [1, 1, 1]} : vector<2x8x96xbf16> to vector<2x8x8xbf16>
    "tpu.trace_start"() <{level = 10 : i32, message = "bqd,bkd->bqk"}> : () -> ()
    %cst_17 = arith.constant dense<0.000000e+00> : vector<2x8x8xf32>
    %48 = tpu.matmul %45, %46, %cst_17 {dimension_numbers = #tpu.dot_dimension_numbers<[2], [2], [1], [1], [0, 0, 0, 1, 1, 1], [0], [0]>} : vector<2x8x8xbf16>, vector<2x8x8xbf16>, vector<2x8x8xf32> -> vector<2x8x8xf32>
    "tpu.trace_stop"() : () -> ()
    %cst_18 = arith.constant 0.353553385 : f32
    %49 = vector.broadcast %cst_18 : f32 to vector<2x8x8xf32>
    %50 = arith.mulf %48, %49 : vector<2x8x8xf32>
    %cst_19 = arith.constant dense<0xFF800000> : vector<2x8xf32>
    %51 = vector.multi_reduction <maximumf>, %50, %cst_19 [2] : vector<2x8x8xf32> to vector<2x8xf32>
    %52 = vector.shape_cast %51 : vector<2x8xf32> to vector<2x8x1xf32>
    %53 = vector.broadcast %52 : vector<2x8x1xf32> to vector<2x8x8xf32>
    %54 = arith.subf %50, %53 : vector<2x8x8xf32>
    %55 = math.exp %54 : vector<2x8x8xf32>
    %cst_20 = arith.constant dense<0.000000e+00> : vector<2x8xf32>
    %56 = vector.multi_reduction <add>, %55, %cst_20 [2] : vector<2x8x8xf32> to vector<2x8xf32>
    %57 = vector.shape_cast %56 : vector<2x8xf32> to vector<2x8x1xf32>
    %58 = tpu.reciprocal %57 {approx = true} : vector<2x8x1xf32> -> vector<2x8x1xf32>
    %59 = vector.broadcast %58 : vector<2x8x1xf32> to vector<2x8x8xf32>
    %60 = arith.mulf %55, %59 : vector<2x8x8xf32>
    %61 = arith.truncf %60 : vector<2x8x8xf32> to vector<2x8x8xbf16>
    "tpu.trace_start"() <{level = 10 : i32, message = "bqk,bkd->bqd"}> : () -> ()
    %cst_21 = arith.constant dense<0.000000e+00> : vector<2x8x8xf32>
    %62 = tpu.matmul %61, %47, %cst_21 {dimension_numbers = #tpu.dot_dimension_numbers<[2], [1], [1], [2], [0, 0, 0, 1, 1, 2], [0], [0]>} : vector<2x8x8xbf16>, vector<2x8x8xbf16>, vector<2x8x8xf32> -> vector<2x8x8xf32>
    "tpu.trace_stop"() : () -> ()
    %63 = vector.shape_cast %62 : vector<2x8x8xf32> to vector<16x8xf32>
    %64 = arith.truncf %63 : vector<16x8xf32> to vector<16x8xbf16>
    %c0_22 = arith.constant 0 : index
    %c0_23 = arith.constant 0 : index
    %65 = vector.load %arg13[%c0_22, %c0_23] : memref<16x32xbf16, #tpu.memory_space<vmem>>, vector<16x8xbf16>
    tpu.vector_store %arg13[%c0_22, %c0_23], %64 {strides = array<i32>} : memref<16x32xbf16, #tpu.memory_space<vmem>>, vector<16x8xbf16>,
    %66 = vector.extract_strided_slice %44 {offsets = [0, 0, 8], sizes = [2, 8, 8], strides = [1, 1, 1]} : vector<2x8x96xbf16> to vector<2x8x8xbf16>
    %67 = vector.extract_strided_slice %44 {offsets = [0, 0, 40], sizes = [2, 8, 8], strides = [1, 1, 1]} : vector<2x8x96xbf16> to vector<2x8x8xbf16>
    %68 = vector.extract_strided_slice %44 {offsets = [0, 0, 72], sizes = [2, 8, 8], strides = [1, 1, 1]} : vector<2x8x96xbf16> to vector<2x8x8xbf16>
    "tpu.trace_start"() <{level = 10 : i32, message = "bqd,bkd->bqk"}> : () -> ()
    %cst_24 = arith.constant dense<0.000000e+00> : vector<2x8x8xf32>
    %69 = tpu.matmul %66, %67, %cst_24 {dimension_numbers = #tpu.dot_dimension_numbers<[2], [2], [1], [1], [0, 0, 0, 1, 1, 1], [0], [0]>} : vector<2x8x8xbf16>, vector<2x8x8xbf16>, vector<2x8x8xf32> -> vector<2x8x8xf32>
    "tpu.trace_stop"() : () -> ()
    %cst_25 = arith.constant 0.353553385 : f32
    %70 = vector.broadcast %cst_25 : f32 to vector<2x8x8xf32>
    %71 = arith.mulf %69, %70 : vector<2x8x8xf32>
    %cst_26 = arith.constant dense<0xFF800000> : vector<2x8xf32>
    %72 = vector.multi_reduction <maximumf>, %71, %cst_26 [2] : vector<2x8x8xf32> to vector<2x8xf32>
    %73 = vector.shape_cast %72 : vector<2x8xf32> to vector<2x8x1xf32>
    %74 = vector.broadcast %73 : vector<2x8x1xf32> to vector<2x8x8xf32>
    %75 = arith.subf %71, %74 : vector<2x8x8xf32>
    %76 = math.exp %75 : vector<2x8x8xf32>
    %cst_27 = arith.constant dense<0.000000e+00> : vector<2x8xf32>
    %77 = vector.multi_reduction <add>, %76, %cst_27 [2] : vector<2x8x8xf32> to vector<2x8xf32>
    %78 = vector.shape_cast %77 : vector<2x8xf32> to vector<2x8x1xf32>
    %79 = tpu.reciprocal %78 {approx = true} : vector<2x8x1xf32> -> vector<2x8x1xf32>
    %80 = vector.broadcast %79 : vector<2x8x1xf32> to vector<2x8x8xf32>
    %81 = arith.mulf %76, %80 : vector<2x8x8xf32>
    %82 = arith.truncf %81 : vector<2x8x8xf32> to vector<2x8x8xbf16>
    "tpu.trace_start"() <{level = 10 : i32, message = "bqk,bkd->bqd"}> : () -> ()
    %cst_28 = arith.constant dense<0.000000e+00> : vector<2x8x8xf32>
    %83 = tpu.matmul %82, %68, %cst_28 {dimension_numbers = #tpu.dot_dimension_numbers<[2], [1], [1], [2], [0, 0, 0, 1, 1, 2], [0], [0]>} : vector<2x8x8xbf16>, vector<2x8x8xbf16>, vector<2x8x8xf32> -> vector<2x8x8xf32>
    "tpu.trace_stop"() : () -> ()
    %84 = vector.shape_cast %83 : vector<2x8x8xf32> to vector<16x8xf32>
    %85 = arith.truncf %84 : vector<16x8xf32> to vector<16x8xbf16>
    %c0_29 = arith.constant 0 : index
    %c8 = arith.constant 8 : index
    %86 = vector.load %arg13[%c0_29, %c8] : memref<16x32xbf16, #tpu.memory_space<vmem>>, vector<16x8xbf16>
    tpu.vector_store %arg13[%c0_29, %c8], %85 {strides = array<i32>} : memref<16x32xbf16, #tpu.memory_space<vmem>>, vector<16x8xbf16>,
    %87 = vector.extract_strided_slice %44 {offsets = [0, 0, 16], sizes = [2, 8, 8], strides = [1, 1, 1]} : vector<2x8x96xbf16> to vector<2x8x8xbf16>
    %88 = vector.extract_strided_slice %44 {offsets = [0, 0, 48], sizes = [2, 8, 8], strides = [1, 1, 1]} : vector<2x8x96xbf16> to vector<2x8x8xbf16>
    %89 = vector.extract_strided_slice %44 {offsets = [0, 0, 80], sizes = [2, 8, 8], strides = [1, 1, 1]} : vector<2x8x96xbf16> to vector<2x8x8xbf16>
    "tpu.trace_start"() <{level = 10 : i32, message = "bqd,bkd->bqk"}> : () -> ()
    %cst_30 = arith.constant dense<0.000000e+00> : vector<2x8x8xf32>
    %90 = tpu.matmul %87, %88, %cst_30 {dimension_numbers = #tpu.dot_dimension_numbers<[2], [2], [1], [1], [0, 0, 0, 1, 1, 1], [0], [0]>} : vector<2x8x8xbf16>, vector<2x8x8xbf16>, vector<2x8x8xf32> -> vector<2x8x8xf32>
    "tpu.trace_stop"() : () -> ()
    %cst_31 = arith.constant 0.353553385 : f32
    %91 = vector.broadcast %cst_31 : f32 to vector<2x8x8xf32>
    %92 = arith.mulf %90, %91 : vector<2x8x8xf32>
    %cst_32 = arith.constant dense<0xFF800000> : vector<2x8xf32>
    %93 = vector.multi_reduction <maximumf>, %92, %cst_32 [2] : vector<2x8x8xf32> to vector<2x8xf32>
    %94 = vector.shape_cast %93 : vector<2x8xf32> to vector<2x8x1xf32>
    %95 = vector.broadcast %94 : vector<2x8x1xf32> to vector<2x8x8xf32>
    %96 = arith.subf %92, %95 : vector<2x8x8xf32>
    %97 = math.exp %96 : vector<2x8x8xf32>
    %cst_33 = arith.constant dense<0.000000e+00> : vector<2x8xf32>
    %98 = vector.multi_reduction <add>, %97, %cst_33 [2] : vector<2x8x8xf32> to vector<2x8xf32>
    %99 = vector.shape_cast %98 : vector<2x8xf32> to vector<2x8x1xf32>
    %100 = tpu.reciprocal %99 {approx = true} : vector<2x8x1xf32> -> vector<2x8x1xf32>
    %101 = vector.broadcast %100 : vector<2x8x1xf32> to vector<2x8x8xf32>
    %102 = arith.mulf %97, %101 : vector<2x8x8xf32>
    %103 = arith.truncf %102 : vector<2x8x8xf32> to vector<2x8x8xbf16>
    "tpu.trace_start"() <{level = 10 : i32, message = "bqk,bkd->bqd"}> : () -> ()
    %cst_34 = arith.constant dense<0.000000e+00> : vector<2x8x8xf32>
    %104 = tpu.matmul %103, %89, %cst_34 {dimension_numbers = #tpu.dot_dimension_numbers<[2], [1], [1], [2], [0, 0, 0, 1, 1, 2], [0], [0]>} : vector<2x8x8xbf16>, vector<2x8x8xbf16>, vector<2x8x8xf32> -> vector<2x8x8xf32>
    "tpu.trace_stop"() : () -> ()
    %105 = vector.shape_cast %104 : vector<2x8x8xf32> to vector<16x8xf32>
    %106 = arith.truncf %105 : vector<16x8xf32> to vector<16x8xbf16>
    %c0_35 = arith.constant 0 : index
    %c16 = arith.constant 16 : index
    %107 = vector.load %arg13[%c0_35, %c16] : memref<16x32xbf16, #tpu.memory_space<vmem>>, vector<16x8xbf16>
    tpu.vector_store %arg13[%c0_35, %c16], %106 {strides = array<i32>} : memref<16x32xbf16, #tpu.memory_space<vmem>>, vector<16x8xbf16>,
    %108 = vector.extract_strided_slice %44 {offsets = [0, 0, 24], sizes = [2, 8, 8], strides = [1, 1, 1]} : vector<2x8x96xbf16> to vector<2x8x8xbf16>
    %109 = vector.extract_strided_slice %44 {offsets = [0, 0, 56], sizes = [2, 8, 8], strides = [1, 1, 1]} : vector<2x8x96xbf16> to vector<2x8x8xbf16>
    %110 = vector.extract_strided_slice %44 {offsets = [0, 0, 88], sizes = [2, 8, 8], strides = [1, 1, 1]} : vector<2x8x96xbf16> to vector<2x8x8xbf16>
    "tpu.trace_start"() <{level = 10 : i32, message = "bqd,bkd->bqk"}> : () -> ()
    %cst_36 = arith.constant dense<0.000000e+00> : vector<2x8x8xf32>
    %111 = tpu.matmul %108, %109, %cst_36 {dimension_numbers = #tpu.dot_dimension_numbers<[2], [2], [1], [1], [0, 0, 0, 1, 1, 1], [0], [0]>} : vector<2x8x8xbf16>, vector<2x8x8xbf16>, vector<2x8x8xf32> -> vector<2x8x8xf32>
    "tpu.trace_stop"() : () -> ()
    %cst_37 = arith.constant 0.353553385 : f32
    %112 = vector.broadcast %cst_37 : f32 to vector<2x8x8xf32>
    %113 = arith.mulf %111, %112 : vector<2x8x8xf32>
    %cst_38 = arith.constant dense<0xFF800000> : vector<2x8xf32>
    %114 = vector.multi_reduction <maximumf>, %113, %cst_38 [2] : vector<2x8x8xf32> to vector<2x8xf32>
    %115 = vector.shape_cast %114 : vector<2x8xf32> to vector<2x8x1xf32>
    %116 = vector.broadcast %115 : vector<2x8x1xf32> to vector<2x8x8xf32>
    %117 = arith.subf %113, %116 : vector<2x8x8xf32>
    %118 = math.exp %117 : vector<2x8x8xf32>
    %cst_39 = arith.constant dense<0.000000e+00> : vector<2x8xf32>
    %119 = vector.multi_reduction <add>, %118, %cst_39 [2] : vector<2x8x8xf32> to vector<2x8xf32>
    %120 = vector.shape_cast %119 : vector<2x8xf32> to vector<2x8x1xf32>
    %121 = tpu.reciprocal %120 {approx = true} : vector<2x8x1xf32> -> vector<2x8x1xf32>
    %122 = vector.broadcast %121 : vector<2x8x1xf32> to vector<2x8x8xf32>
    %123 = arith.mulf %118, %122 : vector<2x8x8xf32>
    %124 = arith.truncf %123 : vector<2x8x8xf32> to vector<2x8x8xbf16>
    "tpu.trace_start"() <{level = 10 : i32, message = "bqk,bkd->bqd"}> : () -> ()
    %cst_40 = arith.constant dense<0.000000e+00> : vector<2x8x8xf32>
    %125 = tpu.matmul %124, %110, %cst_40 {dimension_numbers = #tpu.dot_dimension_numbers<[2], [1], [1], [2], [0, 0, 0, 1, 1, 2], [0], [0]>} : vector<2x8x8xbf16>, vector<2x8x8xbf16>, vector<2x8x8xf32> -> vector<2x8x8xf32>
    "tpu.trace_stop"() : () -> ()
    %126 = vector.shape_cast %125 : vector<2x8x8xf32> to vector<16x8xf32>
    %127 = arith.truncf %126 : vector<16x8xf32> to vector<16x8xbf16>
    %c0_41 = arith.constant 0 : index
    %c24 = arith.constant 24 : index
    %128 = vector.load %arg13[%c0_41, %c24] : memref<16x32xbf16, #tpu.memory_space<vmem>>, vector<16x8xbf16>
    tpu.vector_store %arg13[%c0_41, %c24], %127 {strides = array<i32>} : memref<16x32xbf16, #tpu.memory_space<vmem>>, vector<16x8xbf16>,
    %129 = vector.broadcast %7 : vector<1x32xf32> to vector<16x32xf32>
    %130 = arith.addf %4, %129 : vector<16x32xf32>
    %c0_42 = arith.constant 0 : index
    %c0_43 = arith.constant 0 : index
    %131 = vector.load %arg13[%c0_42, %c0_43] : memref<16x32xbf16, #tpu.memory_space<vmem>>, vector<16x32xbf16>
    %c0_44 = arith.constant 0 : index
    %c0_45 = arith.constant 0 : index
    %c0_46 = arith.constant 0 : index
    %132 = vector.load %arg7[%c0_44, %c0_45, %c0_46] : memref<1x32x32xbf16, #tpu.memory_space<vmem>>, vector<1x32x32xbf16>
    %133 = vector.shape_cast %132 : vector<1x32x32xbf16> to vector<32x32xbf16>
    %cst_47 = arith.constant dense<0.000000e+00> : vector<16x32xf32>
    %134 = tpu.matmul %131, %133, %cst_47 {dimension_numbers = #tpu.dot_dimension_numbers<[1], [0], [0], [1], [0, 0, 1, 1], [], []>} : vector<16x32xbf16>, vector<32x32xbf16>, vector<16x32xf32> -> vector<16x32xf32>
    %135 = arith.addf %130, %134 : vector<16x32xf32>
    %cst_48 = arith.constant dense<0.000000e+00> : vector<16xf32>
    %136 = vector.multi_reduction <add>, %135, %cst_48 [1] : vector<16x32xf32> to vector<16xf32>
    %137 = vector.shape_cast %136 : vector<16xf32> to vector<16x1xf32>
    %cst_49 = arith.constant 3.200000e+01 : f32
    %138 = vector.broadcast %cst_49 : f32 to vector<16x1xf32>
    %139 = arith.divf %137, %138 : vector<16x1xf32>
    %140 = vector.broadcast %139 : vector<16x1xf32> to vector<16x32xf32>
    %141 = arith.subf %135, %140 : vector<16x32xf32>
    %142 = arith.mulf %141, %141 : vector<16x32xf32>
    %cst_50 = arith.constant dense<0.000000e+00> : vector<16xf32>
    %143 = vector.multi_reduction <add>, %142, %cst_50 [1] : vector<16x32xf32> to vector<16xf32>
    %144 = vector.shape_cast %143 : vector<16xf32> to vector<16x1xf32>
    %cst_51 = arith.constant 3.200000e+01 : f32
    %145 = vector.broadcast %cst_51 : f32 to vector<16x1xf32>
    %146 = arith.divf %144, %145 : vector<16x1xf32>
    %147 = vector.broadcast %139 : vector<16x1xf32> to vector<16x32xf32>
    %148 = arith.subf %135, %147 : vector<16x32xf32>
    %cst_52 = arith.constant 9.99999974E-6 : f32
    %149 = vector.broadcast %cst_52 : f32 to vector<16x1xf32>
    %150 = arith.addf %146, %149 : vector<16x1xf32>
    %151 = math.rsqrt %150 : vector<16x1xf32>
    %152 = vector.broadcast %151 : vector<16x1xf32> to vector<16x32xf32>
    %153 = arith.mulf %148, %152 : vector<16x32xf32>
    %154 = vector.broadcast %10 : vector<1x32xf32> to vector<16x32xf32>
    %155 = arith.mulf %153, %154 : vector<16x32xf32>
    %156 = vector.broadcast %11 : vector<1x32xf32> to vector<16x32xf32>
    %157 = arith.addf %155, %156 : vector<16x32xf32>
    %158 = arith.truncf %157 : vector<16x32xf32> to vector<16x32xbf16>
    %c0_53 = arith.constant 0 : index
    %c0_54 = arith.constant 0 : index
    %c0_55 = arith.constant 0 : index
    %159 = vector.load %arg8[%c0_53, %c0_54, %c0_55] : memref<1x32x64xbf16, #tpu.memory_space<vmem>>, vector<1x32x64xbf16>
    %160 = vector.shape_cast %159 : vector<1x32x64xbf16> to vector<32x64xbf16>
    %cst_56 = arith.constant dense<0.000000e+00> : vector<16x64xf32>
    %161 = tpu.matmul %158, %160, %cst_56 {dimension_numbers = #tpu.dot_dimension_numbers<[1], [0], [0], [1], [0, 0, 1, 1], [], []>} : vector<16x32xbf16>, vector<32x64xbf16>, vector<16x64xf32> -> vector<16x64xf32>
    %c0_57 = arith.constant 0 : index
    %c0_58 = arith.constant 0 : index
    %c0_59 = arith.constant 0 : index
    %162 = vector.load %arg9[%c0_57, %c0_58, %c0_59] : memref<1x1x64xf32, #tpu.memory_space<vmem>>, vector<1x1x64xf32>
    %163 = vector.shape_cast %162 : vector<1x1x64xf32> to vector<1x64xf32>
    %164 = vector.broadcast %163 : vector<1x64xf32> to vector<16x64xf32>
    %165 = arith.addf %161, %164 : vector<16x64xf32>
    %cst_60 = arith.constant 5.000000e-01 : f32
    %166 = vector.broadcast %cst_60 : f32 to vector<16x64xf32>
    %167 = arith.mulf %166, %165 : vector<16x64xf32>
    %cst_61 = arith.constant 0.707106769 : f32
    %168 = vector.broadcast %cst_61 : f32 to vector<16x64xf32>
    %169 = arith.mulf %165, %168 : vector<16x64xf32>
    %170 = math.erf %169 : vector<16x64xf32>
    %cst_62 = arith.constant 1.000000e+00 : f32
    %171 = vector.broadcast %cst_62 : f32 to vector<16x64xf32>
    %172 = arith.addf %171, %170 : vector<16x64xf32>
    %173 = arith.mulf %167, %172 : vector<16x64xf32>
    %174 = arith.truncf %173 : vector<16x64xf32> to vector<16x64xbf16>
    %c0_63 = arith.constant 0 : index
    %c0_64 = arith.constant 0 : index
    %c0_65 = arith.constant 0 : index
    %175 = vector.load %arg10[%c0_63, %c0_64, %c0_65] : memref<1x64x32xbf16, #tpu.memory_space<vmem>>, vector<1x64x32xbf16>
    %176 = vector.shape_cast %175 : vector<1x64x32xbf16> to vector<64x32xbf16>
    %cst_66 = arith.constant dense<0.000000e+00> : vector<16x32xf32>
    %177 = tpu.matmul %174, %176, %cst_66 {dimension_numbers = #tpu.dot_dimension_numbers<[1], [0], [0], [1], [0, 0, 1, 1], [], []>} : vector<16x64xbf16>, vector<64x32xbf16>, vector<16x32xf32> -> vector<16x32xf32>
    %178 = vector.broadcast %12 : vector<1x32xf32> to vector<16x32xf32>
    %179 = arith.addf %177, %178 : vector<16x32xf32>
    %180 = arith.addf %135, %179 : vector<16x32xf32>
    %181 = vector.shape_cast %180 : vector<16x32xf32> to vector<2x8x32xf32>
    %c0_67 = arith.constant 0 : index
    %c0_68 = arith.constant 0 : index
    %c0_69 = arith.constant 0 : index
    %182 = vector.load %arg12[%c0_67, %c0_68, %c0_69] : memref<2x8x32xf32, #tpu.memory_space<vmem>>, vector<2x8x32xf32>
    tpu.vector_store %arg12[%c0_67, %c0_68, %c0_69], %181 {strides = array<i32>} : memref<2x8x32xf32, #tpu.memory_space<vmem>>, vector<2x8x32xf32>,
    return
  }
  func.func @transform_0(%arg0: i32, %arg1: i32) -> (i32, i32, i32) {
    %c0_i32 = arith.constant 0 : i32
    %c0_i32_0 = arith.constant 0 : i32
    %c0_i32_1 = arith.constant 0 : i32
    return %arg0, %c0_i32, %c0_i32_0 : i32, i32, i32
  }
  func.func @transform_1(%arg0: i32, %arg1: i32) -> (i32, i32) {
    %c0_i32 = arith.constant 0 : i32
    %c0_i32_0 = arith.constant 0 : i32
    %c0_i32_1 = arith.constant 0 : i32
    return %c0_i32, %c0_i32_0 : i32, i32
  }
  func.func @transform_2(%arg0: i32, %arg1: i32) -> (i32, i32) {
    %c0_i32 = arith.constant 0 : i32
    %c0_i32_0 = arith.constant 0 : i32
    %c0_i32_1 = arith.constant 0 : i32
    return %c0_i32, %c0_i32_0 : i32, i32
  }
  func.func @transform_3(%arg0: i32, %arg1: i32) -> (i32, i32, i32) {
    %c0_i32 = arith.constant 0 : i32
    %c0_i32_0 = arith.constant 0 : i32
    %c0_i32_1 = arith.constant 0 : i32
    return %arg1, %c0_i32, %c0_i32_0 : i32, i32, i32
  }
  func.func @transform_4(%arg0: i32, %arg1: i32) -> (i32, i32, i32) {
    %c0_i32 = arith.constant 0 : i32
    %c0_i32_0 = arith.constant 0 : i32
    %c0_i32_1 = arith.constant 0 : i32
    return %arg1, %c0_i32, %c0_i32_0 : i32, i32, i32
  }
  func.func @transform_5(%arg0: i32, %arg1: i32) -> (i32, i32, i32) {
    %c0_i32 = arith.constant 0 : i32
    %c0_i32_0 = arith.constant 0 : i32
    %c0_i32_1 = arith.constant 0 : i32
    return %arg1, %c0_i32, %c0_i32_0 : i32, i32, i32
  }
  func.func @transform_6(%arg0: i32, %arg1: i32) -> (i32, i32, i32) {
    %c0_i32 = arith.constant 0 : i32
    %c0_i32_0 = arith.constant 0 : i32
    %c0_i32_1 = arith.constant 0 : i32
    return %arg1, %c0_i32, %c0_i32_0 : i32, i32, i32
  }
  func.func @transform_7(%arg0: i32, %arg1: i32) -> (i32, i32, i32) {
    %c0_i32 = arith.constant 0 : i32
    %c0_i32_0 = arith.constant 0 : i32
    %c0_i32_1 = arith.constant 0 : i32
    return %arg1, %c0_i32, %c0_i32_0 : i32, i32, i32
  }
  func.func @transform_8(%arg0: i32, %arg1: i32) -> (i32, i32, i32) {
    %c0_i32 = arith.constant 0 : i32
    %c0_i32_0 = arith.constant 0 : i32
    %c0_i32_1 = arith.constant 0 : i32
    return %arg1, %c0_i32, %c0_i32_0 : i32, i32, i32
  }
  func.func @transform_9(%arg0: i32, %arg1: i32) -> (i32, i32, i32) {
    %c0_i32 = arith.constant 0 : i32
    %c0_i32_0 = arith.constant 0 : i32
    %c0_i32_1 = arith.constant 0 : i32
    return %arg1, %c0_i32, %c0_i32_0 : i32, i32, i32
  }
  func.func @transform_10(%arg0: i32, %arg1: i32) -> (i32, i32, i32) {
    %c0_i32 = arith.constant 0 : i32
    %c0_i32_0 = arith.constant 0 : i32
    %c0_i32_1 = arith.constant 0 : i32
    return %arg0, %c0_i32, %c0_i32_0 : i32, i32, i32
  }
}

</mosaic_0001>

<llo_original>
// kernel: tpu_custom_call.1
$region0: #{tpu_custom_call.1}
  #allocation0 [shape = 'u32[]', space=smem, size = 0x4, offset = 0x4, fixed_abs, tag = 'smem constant byte address 0x4 - core index']
  #allocation1 [shape = 'u32[144,128]{1,0:T(1,128)}', space=vmem, size = 0x12000, scoped, tag = 'internal scratch']
  #allocation2 [shape = 'bf16[16,32]{1,0:T(16,128)(2,1)}', space=vmem, size = 0x1000, scoped, tag = 'scratch operand']
  %s0 = inlined_call_operand.vmem [shape: f32[2,8,32], index: 0, kind: input, shape index: {}]
  %s1 = inlined_call_operand.hbm [shape: f32[8,32], index: 1, kind: input, shape index: {}]
  %s2 = inlined_call_operand.vmem [shape: f32[2,32], index: 2, kind: input, shape index: {}]
  %s3 = inlined_call_operand.vmem [shape: bf16[2,32,96], index: 3, kind: input, shape index: {}]
  %s4 = inlined_call_operand.hbm [shape: f32[2,1,96], index: 4, kind: input, shape index: {}]
  %s5 = inlined_call_operand.vmem [shape: bf16[2,32,32], index: 5, kind: input, shape index: {}]
  %s6 = inlined_call_operand.vmem [shape: bf16[2,32,64], index: 6, kind: input, shape index: {}]
  %s7 = inlined_call_operand.hbm [shape: f32[2,1,64], index: 7, kind: input, shape index: {}]
  %s8 = inlined_call_operand.vmem [shape: bf16[2,64,32], index: 8, kind: input, shape index: {}]
  %s9 = inlined_call_operand.vmem [shape: f32[2,6,32], index: 9, kind: input, shape index: {}]
  %s10 = inlined_call_operand.hbm [shape: f32[2,8,32], index: 10, kind: output, shape index: {}]
  %s11 = sld [smem:[#allocation0]]
  $region89: #{tpu_custom_call.1} parent=0
    _
  %s13 = ssub.s32 1, %s11
  %s14 = scalar_select 0, %s13, %s11
  $region1: #{tpu_custom_call.1} parent=0
    #allocation3 [shape = 'u8[4096]{0}', space=vmem, size = 0x1000, scoped, tag = 'input window, operand 1, single buffered']
    #allocation4 [shape = 's32[2]{0}', space=sflag, size = 0x8, scoped, tag = 'scoped memory for tpu_custom_call.1']
    #allocation5 [shape = 's32[2]{0}', space=sflag, size = 0x8, scoped, tag = 'scoped memory for tpu_custom_call.1']
    #allocation6 [shape = 'u8[1024]{0}', space=vmem, size = 0x400, scoped, tag = 'input window, operand 4']
    #allocation7 [shape = 's32[2]{0}', space=sflag, size = 0x8, scoped, tag = 'scoped memory for tpu_custom_call.1']
    #allocation8 [shape = 'u8[1024]{0}', space=vmem, size = 0x400, scoped, tag = 'input window, operand 7']
    #allocation9 [shape = 'u8[8192]{0}', space=vmem, size = 0x2000, scoped, tag = 'output window, operand 0, single buffered']
    %15 = vsyncpa [#allocation4], 0
    %16 = vsyncpa [#allocation7], 0
    %s17 = scalar_lea.sflag [#allocation7], 1
    %18 = vsyncpa %s17, 0
    %19 = vsyncpa [#allocation5], 0
    loop: start=0, step=1, limit=4
    $region2: #{tpu_custom_call.1} parent=1 // loop_pre_header
      _
    $region3: #{tpu_custom_call.1} parent=1 // loop_header
      %s21 = sphi 0, %s25
      %p22 = scmp.ge.s32.totalorder %s21, 4
      %s28 = sphi 0, %s40
      %s29 = sphi 0, %s36
      %s30 = sphi 0, %s28
      %s31 = sphi 0, %s29
      %s32 = sphi 0, %s30
      %s33 = sphi 0, %s31
      %s43 = sphi 0, %s45
      %s46 = sphi 0, %s43
      %s47 = sphi 0, %s46
      %s63 = sphi 0, %s47
      %s67 = sphi 0, %s67
      %s69 = sphi 0, %s67
      %s70 = sphi 0, %s69
      %s84 = sphi 0, %s70
      %s88 = sphi 0, %s88
      %s90 = sphi 0, %s88
      %s91 = sphi 0, %s90
      %s105 = sphi 0, %s91
      %s111 = sphi 0, %s113
      %s114 = sphi 0, %s111
      %s115 = sphi 0, %s114
      %s131 = sphi 0, %s115
      %s137 = sphi 0, %s139
      %s140 = sphi 0, %s137
      %s141 = sphi 0, %s140
      %s157 = sphi 0, %s141
      %s163 = sphi 0, %s165
      %s166 = sphi 0, %s163
      %s167 = sphi 0, %s166
      %s183 = sphi 0, %s167
      %s189 = sphi 0, %s191
      %s192 = sphi 0, %s189
      %s193 = sphi 0, %s192
      %s209 = sphi 0, %s193
      %s215 = sphi 0, %s217
      %s218 = sphi 0, %s215
      %s219 = sphi 0, %s218
      %s235 = sphi 0, %s219
      %s241 = sphi 0, %s243
      %s244 = sphi 0, %s241
      %s245 = sphi 0, %s244
      %s261 = sphi 0, %s245
      %s267 = sphi 0, %s269
      %s270 = sphi 0, %s267
      %s271 = sphi 0, %s270
      %s287 = sphi 0, %s271
      %s293 = sphi 0, %s295
      %s296 = sphi 0, %s293
      %s297 = sphi 0, %s296
      %s313 = sphi 0, %s297
    $region4: #{tpu_custom_call.1} parent=1 // loop_header_branch
      %24 = sbr.rel (%p22) target = $region8
    $region5: #{tpu_custom_call.1} parent=1 // loop_body
      %s26 = ssub.s32 %s21, 1
      %s27 = ssub.s32 %s21, 2
      %s34 = sadd.s32 1, %s29
      %p35 = scmp.ge.s32.totalorder %s34, 2
      %s36 = scalar_select %p35, 0, %s34
      %s37 = sadd.s32 1, %s28
      %s38 = scalar_select %p35, %s37, %s28
      %p39 = scmp.ge.s32.totalorder %s38, 1
      %s40 = scalar_select %p39, 0, %s38
      %s41 = ssub.s32 %s28, %s40
      %p42 = scmp.eq.s32.totalorder %s41, 0
      %s44 = sadd.s32 %s43, 1
      %s45 = scalar_select %p42, %s43, %s44
      %p48 = pneg %p42
      %p49 = scmp.eq.s32.totalorder %s21, 1
      %p50 = por %p48, %p49
      %p51 = scmp.ne.s32.totalorder %s43, %s46
      %p52 = scmp.eq.s32.totalorder %s21, 0
      %p53 = por %p51, %p52
      %p54 = scmp.ne.s32.totalorder %s43, %s46
      %p55 = scmp.eq.s32.totalorder %s26, 1
      %p56 = por %p54, %p55
      %p57 = scmp.ne.s32.totalorder %s46, %s47
      %p58 = scmp.eq.s32.totalorder %s26, 0
      %p59 = por %p57, %p58
      %p60 = scmp.ne.s32.totalorder %s46, %s47
      %p61 = scmp.eq.s32.totalorder %s27, 1
      %p62 = por %p60, %p61
      %p64 = scmp.ne.s32.totalorder %s47, %s63
      %p65 = scmp.eq.s32.totalorder %s27, 0
      %p66 = por %p64, %p65
      %s68 = sadd.s32 %s67, 1
      %p71 = scmp.eq.s32.totalorder %s21, 1
      %p72 = scmp.ne.s32.totalorder %s67, %s69
      %p73 = scmp.eq.s32.totalorder %s21, 0
      %p74 = por %p72, %p73
      %p75 = scmp.ne.s32.totalorder %s67, %s69
      %p76 = scmp.eq.s32.totalorder %s26, 1
      %p77 = por %p75, %p76
      %p78 = scmp.ne.s32.totalorder %s69, %s70
      %p79 = scmp.eq.s32.totalorder %s26, 0
      %p80 = por %p78, %p79
      %p81 = scmp.ne.s32.totalorder %s69, %s70
      %p82 = scmp.eq.s32.totalorder %s27, 1
      %p83 = por %p81, %p82
      %p85 = scmp.ne.s32.totalorder %s70, %s84
      %p86 = scmp.eq.s32.totalorder %s27, 0
      %p87 = por %p85, %p86
      %s89 = sadd.s32 %s88, 1
      %p92 = scmp.eq.s32.totalorder %s21, 1
      %p93 = scmp.ne.s32.totalorder %s88, %s90
      %p94 = scmp.eq.s32.totalorder %s21, 0
      %p95 = por %p93, %p94
      %p96 = scmp.ne.s32.totalorder %s88, %s90
      %p97 = scmp.eq.s32.totalorder %s26, 1
      %p98 = por %p96, %p97
      %p99 = scmp.ne.s32.totalorder %s90, %s91
      %p100 = scmp.eq.s32.totalorder %s26, 0
      %p101 = por %p99, %p100
      %p102 = scmp.ne.s32.totalorder %s90, %s91
      %p103 = scmp.eq.s32.totalorder %s27, 1
      %p104 = por %p102, %p103
      %p106 = scmp.ne.s32.totalorder %s91, %s105
      %p107 = scmp.eq.s32.totalorder %s27, 0
      %p108 = por %p106, %p107
      %s109 = ssub.s32 %s29, %s36
      %p110 = scmp.eq.s32.totalorder %s109, 0
      %s112 = sadd.s32 %s111, 1
      %s113 = scalar_select %p110, %s111, %s112
      %p116 = pneg %p110
      %p117 = scmp.eq.s32.totalorder %s21, 1
      %p118 = por %p116, %p117
      %p119 = scmp.ne.s32.totalorder %s111, %s114
      %p120 = scmp.eq.s32.totalorder %s21, 0
      %p121 = por %p119, %p120
      %p122 = scmp.ne.s32.totalorder %s111, %s114
      %p123 = scmp.eq.s32.totalorder %s26, 1
      %p124 = por %p122, %p123
      %p125 = scmp.ne.s32.totalorder %s114, %s115
      %p126 = scmp.eq.s32.totalorder %s26, 0
      %p127 = por %p125, %p126
      %p128 = scmp.ne.s32.totalorder %s114, %s115
      %p129 = scmp.eq.s32.totalorder %s27, 1
      %p130 = por %p128, %p129
      %p132 = scmp.ne.s32.totalorder %s115, %s131
      %p133 = scmp.eq.s32.totalorder %s27, 0
      %p134 = por %p132, %p133
      %s135 = ssub.s32 %s29, %s36
      %p136 = scmp.eq.s32.totalorder %s135, 0
      %s138 = sadd.s32 %s137, 1
      %s139 = scalar_select %p136, %s137, %s138
      %p142 = pneg %p136
      %p143 = scmp.eq.s32.totalorder %s21, 1
      %p144 = por %p142, %p143
      %p145 = scmp.ne.s32.totalorder %s137, %s140
      %p146 = scmp.eq.s32.totalorder %s21, 0
      %p147 = por %p145, %p146
      %p148 = scmp.ne.s32.totalorder %s137, %s140
      %p149 = scmp.eq.s32.totalorder %s26, 1
      %p150 = por %p148, %p149
      %p151 = scmp.ne.s32.totalorder %s140, %s141
      %p152 = scmp.eq.s32.totalorder %s26, 0
      %p153 = por %p151, %p152
      %p154 = scmp.ne.s32.totalorder %s140, %s141
      %p155 = scmp.eq.s32.totalorder %s27, 1
      %p156 = por %p154, %p155
      %p158 = scmp.ne.s32.totalorder %s141, %s157
      %p159 = scmp.eq.s32.totalorder %s27, 0
      %p160 = por %p158, %p159
      %s161 = ssub.s32 %s29, %s36
      %p162 = scmp.eq.s32.totalorder %s161, 0
      %s164 = sadd.s32 %s163, 1
      %s165 = scalar_select %p162, %s163, %s164
      %p168 = pneg %p162
      %p169 = scmp.eq.s32.totalorder %s21, 1
      %p170 = por %p168, %p169
      %p171 = scmp.ne.s32.totalorder %s163, %s166
      %p172 = scmp.eq.s32.totalorder %s21, 0
      %p173 = por %p171, %p172
      %p174 = scmp.ne.s32.totalorder %s163, %s166
      %p175 = scmp.eq.s32.totalorder %s26, 1
      %p176 = por %p174, %p175
      %p177 = scmp.ne.s32.totalorder %s166, %s167
      %p178 = scmp.eq.s32.totalorder %s26, 0
      %p179 = por %p177, %p178
      %p180 = scmp.ne.s32.totalorder %s166, %s167
      %p181 = scmp.eq.s32.totalorder %s27, 1
      %p182 = por %p180, %p181
      %p184 = scmp.ne.s32.totalorder %s167, %s183
      %p185 = scmp.eq.s32.totalorder %s27, 0
      %p186 = por %p184, %p185
      %s187 = ssub.s32 %s29, %s36
      %p188 = scmp.eq.s32.totalorder %s187, 0
      %s190 = sadd.s32 %s189, 1
      %s191 = scalar_select %p188, %s189, %s190
      %p194 = pneg %p188
      %p195 = scmp.eq.s32.totalorder %s21, 1
      %p196 = por %p194, %p195
      %p197 = scmp.ne.s32.totalorder %s189, %s192
      %p198 = scmp.eq.s32.totalorder %s21, 0
      %p199 = por %p197, %p198
      %p200 = scmp.ne.s32.totalorder %s189, %s192
      %p201 = scmp.eq.s32.totalorder %s26, 1
      %p202 = por %p200, %p201
      %p203 = scmp.ne.s32.totalorder %s192, %s193
      %p204 = scmp.eq.s32.totalorder %s26, 0
      %p205 = por %p203, %p204
      %p206 = scmp.ne.s32.totalorder %s192, %s193
      %p207 = scmp.eq.s32.totalorder %s27, 1
      %p208 = por %p206, %p207
      %p210 = scmp.ne.s32.totalorder %s193, %s209
      %p211 = scmp.eq.s32.totalorder %s27, 0
      %p212 = por %p210, %p211
      %s213 = ssub.s32 %s29, %s36
      %p214 = scmp.eq.s32.totalorder %s213, 0
      %s216 = sadd.s32 %s215, 1
      %s217 = scalar_select %p214, %s215, %s216
      %p220 = pneg %p214
      %p221 = scmp.eq.s32.totalorder %s21, 1
      %p222 = por %p220, %p221
      %p223 = scmp.ne.s32.totalorder %s215, %s218
      %p224 = scmp.eq.s32.totalorder %s21, 0
      %p225 = por %p223, %p224
      %p226 = scmp.ne.s32.totalorder %s215, %s218
      %p227 = scmp.eq.s32.totalorder %s26, 1
      %p228 = por %p226, %p227
      %p229 = scmp.ne.s32.totalorder %s218, %s219
      %p230 = scmp.eq.s32.totalorder %s26, 0
      %p231 = por %p229, %p230
      %p232 = scmp.ne.s32.totalorder %s218, %s219
      %p233 = scmp.eq.s32.totalorder %s27, 1
      %p234 = por %p232, %p233
      %p236 = scmp.ne.s32.totalorder %s219, %s235
      %p237 = scmp.eq.s32.totalorder %s27, 0
      %p238 = por %p236, %p237
      %s239 = ssub.s32 %s29, %s36
      %p240 = scmp.eq.s32.totalorder %s239, 0
      %s242 = sadd.s32 %s241, 1
      %s243 = scalar_select %p240, %s241, %s242
      %p246 = pneg %p240
      %p247 = scmp.eq.s32.totalorder %s21, 1
      %p248 = por %p246, %p247
      %p249 = scmp.ne.s32.totalorder %s241, %s244
      %p250 = scmp.eq.s32.totalorder %s21, 0
      %p251 = por %p249, %p250
      %p252 = scmp.ne.s32.totalorder %s241, %s244
      %p253 = scmp.eq.s32.totalorder %s26, 1
      %p254 = por %p252, %p253
      %p255 = scmp.ne.s32.totalorder %s244, %s245
      %p256 = scmp.eq.s32.totalorder %s26, 0
      %p257 = por %p255, %p256
      %p258 = scmp.ne.s32.totalorder %s244, %s245
      %p259 = scmp.eq.s32.totalorder %s27, 1
      %p260 = por %p258, %p259
      %p262 = scmp.ne.s32.totalorder %s245, %s261
      %p263 = scmp.eq.s32.totalorder %s27, 0
      %p264 = por %p262, %p263
      %s265 = ssub.s32 %s29, %s36
      %p266 = scmp.eq.s32.totalorder %s265, 0
      %s268 = sadd.s32 %s267, 1
      %s269 = scalar_select %p266, %s267, %s268
      %p272 = pneg %p266
      %p273 = scmp.eq.s32.totalorder %s21, 1
      %p274 = por %p272, %p273
      %p275 = scmp.ne.s32.totalorder %s267, %s270
      %p276 = scmp.eq.s32.totalorder %s21, 0
      %p277 = por %p275, %p276
      %p278 = scmp.ne.s32.totalorder %s267, %s270
      %p279 = scmp.eq.s32.totalorder %s26, 1
      %p280 = por %p278, %p279
      %p281 = scmp.ne.s32.totalorder %s270, %s271
      %p282 = scmp.eq.s32.totalorder %s26, 0
      %p283 = por %p281, %p282
      %p284 = scmp.ne.s32.totalorder %s270, %s271
      %p285 = scmp.eq.s32.totalorder %s27, 1
      %p286 = por %p284, %p285
      %p288 = scmp.ne.s32.totalorder %s271, %s287
      %p289 = scmp.eq.s32.totalorder %s27, 0
      %p290 = por %p288, %p289
      %s291 = ssub.s32 %s28, %s40
      %p292 = scmp.eq.s32.totalorder %s291, 0
      %s294 = sadd.s32 %s293, 1
      %s295 = scalar_select %p292, %s293, %s294
      %p298 = pneg %p292
      %p299 = scmp.eq.s32.totalorder %s21, 1
      %p300 = por %p298, %p299
      %p301 = scmp.ne.s32.totalorder %s293, %s296
      %p302 = scmp.eq.s32.totalorder %s21, 0
      %p303 = por %p301, %p302
      %p304 = scmp.ne.s32.totalorder %s293, %s296
      %p305 = scmp.eq.s32.totalorder %s26, 1
      %p306 = por %p304, %p305
      %p307 = scmp.ne.s32.totalorder %s296, %s297
      %p308 = scmp.eq.s32.totalorder %s26, 0
      %p309 = por %p307, %p308
      %p310 = scmp.ne.s32.totalorder %s296, %s297
      %p311 = scmp.eq.s32.totalorder %s27, 1
      %p312 = por %p310, %p311
      %p314 = scmp.ne.s32.totalorder %s297, %s313
      %p315 = scmp.eq.s32.totalorder %s27, 0
      %p316 = por %p314, %p315
      %p317 = scmp.le.s32.totalorder 1, %s21
      %p318 = scmp.lt.s32.totalorder %s21, 3
      %p319 = pnand %p317, %p318
      %p320 = pneg %p319
      // Predicated region
      $region9: #{tpu_custom_call.1} parent=5 // pred_check
        _
      $region10: #{tpu_custom_call.1} parent=5 // pred_check_branch
        %322 = sbr.rel (%p319) target = $region12
      $region11: #{tpu_custom_call.1} parent=5 // pred_region
        %s323 = ssub.s32 %s21, 1
        // Predicated region
        $region13: #{tpu_custom_call.1} parent=11 // pred_check
          %p324 = pneg %p59
        $region14: #{tpu_custom_call.1} parent=11 // pred_check_branch
          %326 = sbr.rel (%p324) target = $region16
        $region15: #{tpu_custom_call.1} parent=11 // pred_region
          %s327 = smul.u32 2, %s30
          %p328 = scmp.lt.s32.totalorder %s327, 1
          %s329 = scalar_select %p328, %s327, 1
          %s330 = smul.addr %s329, 8
          %s331 = scalar_lea.vmem %s0, %s330
          %s332 = smul.u32 2, %s30
        $region16: #{tpu_custom_call.1} parent=11 // pred_fallthru
          _
        // Predicated region
        $region17: #{tpu_custom_call.1} parent=11 // pred_check
          %p333 = pneg %p80
        $region18: #{tpu_custom_call.1} parent=11 // pred_check_branch
          %335 = sbr.rel (%p333) target = $region20
        $region19: #{tpu_custom_call.1} parent=11 // pred_region
          %s337 = ssub.s32 128, 128
          %338 = vsyncadd [#allocation4], %s337
          %s340 = sshll.u32 [#allocation3], 4
          %s341 = int_to_ptr.vmem [resolvable:$true] %s340
          %343 = dma.hbm_to_vmem [thread:$0]  %s1, 128, %s341, [#allocation4]
        $region20: #{tpu_custom_call.1} parent=11 // pred_fallthru
          _
        // Predicated region
        $region21: #{tpu_custom_call.1} parent=11 // pred_check
          %p344 = pneg %p101
        $region22: #{tpu_custom_call.1} parent=11 // pred_check_branch
          %346 = sbr.rel (%p344) target = $region24
        $region23: #{tpu_custom_call.1} parent=11 // pred_region
          _
        $region24: #{tpu_custom_call.1} parent=11 // pred_fallthru
          _
      $region12: #{tpu_custom_call.1} parent=5 // pred_fallthru
        _
      %p347 = scmp.lt.s32.totalorder %s21, 2
      // Predicated region
      $region25: #{tpu_custom_call.1} parent=5 // pred_check
        %p348 = pneg %p347
      $region26: #{tpu_custom_call.1} parent=5 // pred_check_branch
        %350 = sbr.rel (%p348) target = $region28
      $region27: #{tpu_custom_call.1} parent=5 // pred_region
        // Predicated region
        $region29: #{tpu_custom_call.1} parent=27 // pred_check
          %p351 = pneg %p121
        $region30: #{tpu_custom_call.1} parent=27 // pred_check_branch
          %353 = sbr.rel (%p351) target = $region32
        $region31: #{tpu_custom_call.1} parent=27 // pred_region
          %p354 = scmp.lt.s32.totalorder %s29, 1
          %s355 = scalar_select %p354, %s29, 1
          %s356 = smul.addr %s355, 4
          %s357 = smul.addr %s356, 4
          %s358 = scalar_lea.vmem %s3, %s357
        $region32: #{tpu_custom_call.1} parent=27 // pred_fallthru
          _
        // Predicated region
        $region33: #{tpu_custom_call.1} parent=27 // pred_check
          %p359 = pneg %p147
        $region34: #{tpu_custom_call.1} parent=27 // pred_check_branch
          %361 = sbr.rel (%p359) target = $region36
        $region35: #{tpu_custom_call.1} parent=27 // pred_region
          %s362 = sand.u32 %s21, 1
          %s363 = scalar_lea.sflag [#allocation7], %s362
          %s364 = sand.u32 %s137, 1
          %s365 = scalar_lea.vmem [#allocation6], %s364
          %s367 = ssub.s32 16, 16
          %368 = vsyncadd %s363, %s367
          %s369 = smul.addr %s29, 16
          %s370 = scalar_lea.hbm %s4, %s369
          %s372 = sshll.u32 %s365, 4
          %s373 = int_to_ptr.vmem [resolvable:$true] %s372
          %375 = dma.hbm_to_vmem [thread:$0]  %s370, 16, %s373, %s363
        $region36: #{tpu_custom_call.1} parent=27 // pred_fallthru
          _
        // Predicated region
        $region37: #{tpu_custom_call.1} parent=27 // pred_check
          %p376 = pneg %p173
        $region38: #{tpu_custom_call.1} parent=27 // pred_check_branch
          %378 = sbr.rel (%p376) target = $region40
        $region39: #{tpu_custom_call.1} parent=27 // pred_region
          %p379 = scmp.lt.s32.totalorder %s29, 1
          %s380 = scalar_select %p379, %s29, 1
          %s381 = smul.addr %s380, 4
          %s382 = smul.addr %s381, 4
          %s383 = scalar_lea.vmem %s5, %s382
        $region40: #{tpu_custom_call.1} parent=27 // pred_fallthru
          _
        // Predicated region
        $region41: #{tpu_custom_call.1} parent=27 // pred_check
          %p384 = pneg %p199
        $region42: #{tpu_custom_call.1} parent=27 // pred_check_branch
          %386 = sbr.rel (%p384) target = $region44
        $region43: #{tpu_custom_call.1} parent=27 // pred_region
          %p387 = scmp.lt.s32.totalorder %s29, 1
          %s388 = scalar_select %p387, %s29, 1
          %s389 = smul.addr %s388, 4
          %s390 = smul.addr %s389, 4
          %s391 = scalar_lea.vmem %s6, %s390
        $region44: #{tpu_custom_call.1} parent=27 // pred_fallthru
          _
        // Predicated region
        $region45: #{tpu_custom_call.1} parent=27 // pred_check
          %p392 = pneg %p225
        $region46: #{tpu_custom_call.1} parent=27 // pred_check_branch
          %394 = sbr.rel (%p392) target = $region48
        $region47: #{tpu_custom_call.1} parent=27 // pred_region
          %s395 = sand.u32 %s21, 1
          %s396 = scalar_lea.sflag [#allocation7], %s395
          %s397 = sand.u32 %s215, 1
          %s398 = scalar_lea.vmem [#allocation8], %s397
          %s400 = ssub.s32 16, 16
          %401 = vsyncadd %s396, %s400
          %s402 = smul.addr %s29, 16
          %s403 = scalar_lea.hbm %s7, %s402
          %s405 = sshll.u32 %s398, 4
          %s406 = int_to_ptr.vmem [resolvable:$true] %s405
          %408 = dma.hbm_to_vmem [thread:$0]  %s403, 16, %s406, %s396
        $region48: #{tpu_custom_call.1} parent=27 // pred_fallthru
          _
        // Predicated region
        $region49: #{tpu_custom_call.1} parent=27 // pred_check
          %p409 = pneg %p251
        $region50: #{tpu_custom_call.1} parent=27 // pred_check_branch
          %411 = sbr.rel (%p409) target = $region52
        $region51: #{tpu_custom_call.1} parent=27 // pred_region
          %p412 = scmp.lt.s32.totalorder %s29, 1
          %s413 = scalar_select %p412, %s29, 1
          %s414 = smul.addr %s413, 8
          %s415 = smul.addr %s414, 4
          %s416 = scalar_lea.vmem %s8, %s415
        $region52: #{tpu_custom_call.1} parent=27 // pred_fallthru
          _
        // Predicated region
        $region53: #{tpu_custom_call.1} parent=27 // pred_check
          %p417 = pneg %p277
        $region54: #{tpu_custom_call.1} parent=27 // pred_check_branch
          %419 = sbr.rel (%p417) target = $region56
        $region55: #{tpu_custom_call.1} parent=27 // pred_region
          %p420 = scmp.lt.s32.totalorder %s29, 1
          %s421 = scalar_select %p420, %s29, 1
          %s422 = smul.addr %s421, 8
          %s423 = scalar_lea.vmem %s9, %s422
        $region56: #{tpu_custom_call.1} parent=27 // pred_fallthru
          _
      $region28: #{tpu_custom_call.1} parent=5 // pred_fallthru
        _
      %p424 = scmp.le.s32.totalorder 1, %s21
      %p425 = scmp.lt.s32.totalorder %s21, 3
      %p426 = pnand %p424, %p425
      %p427 = pneg %p426
      // Predicated region
      $region57: #{tpu_custom_call.1} parent=5 // pred_check
        _
      $region58: #{tpu_custom_call.1} parent=5 // pred_check_branch
        %429 = sbr.rel (%p426) target = $region60
      $region59: #{tpu_custom_call.1} parent=5 // pred_region
        %s430 = ssub.s32 %s21, 1
        // Predicated region
        $region61: #{tpu_custom_call.1} parent=59 // pred_check
          %p431 = pneg %p80
        $region62: #{tpu_custom_call.1} parent=59 // pred_check_branch
          %433 = sbr.rel (%p431) target = $region64
        $region63: #{tpu_custom_call.1} parent=59 // pred_region
          %434 = dma.done [#allocation4], 128
        $region64: #{tpu_custom_call.1} parent=59 // pred_fallthru
          _
        %s435 = sand.u32 %s26, 1
        %s436 = scalar_lea.sflag [#allocation7], %s435
        %s437 = sand.u32 %s140, 1
        %s438 = scalar_lea.vmem [#allocation6], %s437
        // Predicated region
        $region65: #{tpu_custom_call.1} parent=59 // pred_check
          %p439 = pneg %p153
        $region66: #{tpu_custom_call.1} parent=59 // pred_check_branch
          %441 = sbr.rel (%p439) target = $region68
        $region67: #{tpu_custom_call.1} parent=59 // pred_region
          %442 = dma.done %s436, 16
        $region68: #{tpu_custom_call.1} parent=59 // pred_fallthru
          _
        %s443 = sand.u32 %s26, 1
        %s444 = scalar_lea.sflag [#allocation7], %s443
        %s445 = sand.u32 %s218, 1
        %s446 = scalar_lea.vmem [#allocation8], %s445
        // Predicated region
        $region69: #{tpu_custom_call.1} parent=59 // pred_check
          %p447 = pneg %p231
        $region70: #{tpu_custom_call.1} parent=59 // pred_check_branch
          %449 = sbr.rel (%p447) target = $region72
        $region71: #{tpu_custom_call.1} parent=59 // pred_region
          %450 = dma.done %s444, 16
        $region72: #{tpu_custom_call.1} parent=59 // pred_fallthru
          _
        %s451 = smul.u32 2, %s30
        %p452 = scmp.lt.s32.totalorder %s451, 1
        %s453 = scalar_select %p452, %s451, 1
        %s454 = smul.addr %s453, 8
        %s455 = scalar_lea.vmem %s0, %s454
        %p456 = pneg %p59
        %p457 = pneg %p56
        %p458 = pneg %p80
        %p459 = pneg %p77
        %p460 = pneg %p101
        %p461 = pneg %p98
        %p462 = scmp.lt.s32.totalorder %s31, 1
        %s463 = scalar_select %p462, %s31, 1
        %s464 = smul.addr %s463, 4
        %s465 = smul.addr %s464, 4
        %s466 = scalar_lea.vmem %s3, %s465
        %p467 = pneg %p127
        %p468 = pneg %p124
        %s469 = sand.u32 %s26, 1
        %s470 = scalar_lea.sflag [#allocation7], %s469
        %s471 = sand.u32 %s140, 1
        %s472 = scalar_lea.vmem [#allocation6], %s471
        %p473 = pneg %p153
        %p474 = pneg %p150
        %p475 = scmp.lt.s32.totalorder %s31, 1
        %s476 = scalar_select %p475, %s31, 1
        %s477 = smul.addr %s476, 4
        %s478 = smul.addr %s477, 4
        %s479 = scalar_lea.vmem %s5, %s478
        %p480 = pneg %p179
        %p481 = pneg %p176
        %p482 = scmp.lt.s32.totalorder %s31, 1
        %s483 = scalar_select %p482, %s31, 1
        %s484 = smul.addr %s483, 4
        %s485 = smul.addr %s484, 4
        %s486 = scalar_lea.vmem %s6, %s485
        %p487 = pneg %p205
        %p488 = pneg %p202
        %s489 = sand.u32 %s26, 1
        %s490 = scalar_lea.sflag [#allocation7], %s489
        %s491 = sand.u32 %s218, 1
        %s492 = scalar_lea.vmem [#allocation8], %s491
        %p493 = pneg %p231
        %p494 = pneg %p228
        %p495 = scmp.lt.s32.totalorder %s31, 1
        %s496 = scalar_select %p495, %s31, 1
        %s497 = smul.addr %s496, 8
        %s498 = smul.addr %s497, 4
        %s499 = scalar_lea.vmem %s8, %s498
        %p500 = pneg %p257
        %p501 = pneg %p254
        %p502 = scmp.lt.s32.totalorder %s31, 1
        %s503 = scalar_select %p502, %s31, 1
        %s504 = smul.addr %s503, 8
        %s505 = scalar_lea.vmem %s9, %s504
        %p506 = pneg %p283
        %p507 = pneg %p280
        %p508 = pneg %p309
        %p509 = pneg %p306
        %s510 = smul.u32 2, %s30
        %p511 = scmp.lt.s32.totalorder %s510, 1
        %s512 = scalar_select %p511, %s510, 1
        %s513 = smul.addr %s512, 8
        %s514 = scalar_lea.vmem %s0, %s513
        %s515 = smul.u32 2, %s30
        %p516 = scmp.lt.s32.totalorder %s31, 1
        %s517 = scalar_select %p516, %s31, 1
        %s518 = smul.addr %s517, 4
        %s519 = smul.addr %s518, 4
        %s520 = scalar_lea.vmem %s3, %s519
        %p521 = scmp.lt.s32.totalorder %s31, 1
        %s522 = scalar_select %p521, %s31, 1
        %s523 = smul.addr %s522, 4
        %s524 = smul.addr %s523, 4
        %s525 = scalar_lea.vmem %s5, %s524
        %p526 = scmp.lt.s32.totalorder %s31, 1
        %s527 = scalar_select %p526, %s31, 1
        %s528 = smul.addr %s527, 4
        %s529 = smul.addr %s528, 4
        %s530 = scalar_lea.vmem %s6, %s529
        %p531 = scmp.lt.s32.totalorder %s31, 1
        %s532 = scalar_select %p531, %s31, 1
        %s533 = smul.addr %s532, 8
        %s534 = smul.addr %s533, 4
        %s535 = scalar_lea.vmem %s8, %s534
        %p536 = scmp.lt.s32.totalorder %s31, 1
        %s537 = scalar_select %p536, %s31, 1
        %s538 = smul.addr %s537, 8
        %s539 = scalar_lea.vmem %s9, %s538
        %s540 = smul.u32 2, %s30
        %p542 = scmp.eq.s32.totalorder %s31, 0
        // Predicated region
        $region73: #{tpu_custom_call.1} parent=59 // pred_check
          %p543 = pneg %p542
        $region74: #{tpu_custom_call.1} parent=59 // pred_check_branch
          %545 = sbr.rel (%p543) target = $region76
        $region75: #{tpu_custom_call.1} parent=59 // pred_region
          %v546 = vld [vmem:[%s514] sm:$0xff]
          %v547 = vld [vmem:[%s514 + $0x8] sm:$0xff]
          %v548 = vld [vmem:[#allocation3] sm:$0xff]
          %v549 = vadd.f32 %v546, %v548
          %v550 = vadd.f32 %v547, %v548
          %v551 = vld [vmem:[%s2] sm:$0x1]
          %v552 = vld [vmem:[%s2 + $0x1] sm:$0x1]
          %vm553 = vcmask 261120
          %v554 = vsel %vm553, %v549, 0.0
          %555 = vadd.xlane.f32.xlu0 %v554
          %v556 = vpop.xlane.xlu0 %555
          %v557 = vsel %vm553, %v550, 0.0
          %558 = vadd.xlane.f32.xlu0 %v557
          %v559 = vpop.xlane.xlu0 %558
          %v560 = vrcp.pop 32.0
          %v561 = vmul.f32 %v556, %v560
          %v562 = vmul.f32 %v559, %v560
          %v563 = vsub.f32 %v549, %v561
          %v564 = vsub.f32 %v550, %v562
          %v565 = vmul.f32 %v563, %v563
          %v566 = vmul.f32 %v564, %v564
          %v567 = vsel %vm553, %v565, 0.0
          %568 = vadd.xlane.f32.xlu0 %v567
          %v569 = vpop.xlane.xlu0 %568
          %v570 = vsel %vm553, %v566, 0.0
          %571 = vadd.xlane.f32.xlu0 %v570
          %v572 = vpop.xlane.xlu0 %571
          %v573 = vmul.f32 %v569, %v560
          %v574 = vmul.f32 %v572, %v560
          %v575 = vadd.f32 %v573, 1e-12
          %v576 = vadd.f32 %v574, 1e-12
          %v577 = vrsqrt.pop %v575
          %v578 = vrsqrt.pop %v576
          %v579 = vmul.f32 %v563, %v577
          %v580 = vmul.f32 %v564, %v578
          %v581 = vlaneseq
          %v582 = vshrl.u32 %v581, 7
          %v583 = vsub.s32 0, %v582
          %v584 = vrot.slane %v551, %v583
          %v585 = vmul.f32 %v579, %v584
          %v586 = vmul.f32 %v580, %v584
          %v587 = vlaneseq
          %v588 = vshrl.u32 %v587, 7
          %v589 = vsub.s32 0, %v588
          %v590 = vrot.slane %v552, %v589
          %v591 = vadd.f32 %v585, %v590
          %v592 = vadd.f32 %v586, %v590
          %593 = vst.msk [vmem:[#allocation9] sm:$0xff] %vm553, %v591
          %594 = vst.msk [vmem:[#allocation9 + $0x8] sm:$0xff] %vm553, %v592
        $region76: #{tpu_custom_call.1} parent=59 // pred_fallthru
          _
        %v595 = vld [vmem:[#allocation9] sm:$0xff]
        %v596 = vld [vmem:[#allocation9 + $0x8] sm:$0xff]
        %v597 = vld [vmem:[%s539] sm:$0x3f]
        %vm598 = vcmask 261120
        %v599 = vsel %vm598, %v595, 0.0
        %600 = vadd.xlane.f32.xlu0 %v599
        %v601 = vpop.xlane.xlu0 %600
        %v602 = vsel %vm598, %v596, 0.0
        %603 = vadd.xlane.f32.xlu0 %v602
        %v604 = vpop.xlane.xlu0 %603
        %v605 = vrcp.pop 32.0
        %v606 = vmul.f32 %v601, %v605
        %v607 = vmul.f32 %v604, %v605
        %v608 = vsub.f32 %v595, %v606
        %v609 = vsub.f32 %v596, %v607
        %v610 = vmul.f32 %v608, %v608
        %v611 = vmul.f32 %v609, %v609
        %v612 = vsel %vm598, %v610, 0.0
        %613 = vadd.xlane.f32.xlu0 %v612
        %v614 = vpop.xlane.xlu0 %613
        %v615 = vsel %vm598, %v611, 0.0
        %616 = vadd.xlane.f32.xlu0 %v615
        %v617 = vpop.xlane.xlu0 %616
        %v618 = vmul.f32 %v614, %v605
        %v619 = vmul.f32 %v617, %v605
        %v620 = vadd.f32 %v618, 1e-05
        %v621 = vadd.f32 %v619, 1e-05
        %v622 = vrsqrt.pop %v620
        %v623 = vrsqrt.pop %v621
        %v624 = vmul.f32 %v608, %v622
        %v625 = vmul.f32 %v609, %v623
        %v626 = vlaneseq
        %v627 = vshrl.u32 %v626, 7
        %v628 = vsub.s32 1, %v627
        %v629 = vrot.slane %v597, %v628
        %v630 = vmul.f32 %v624, %v629
        %v631 = vmul.f32 %v625, %v629
        %v632 = vlaneseq
        %v633 = vshrl.u32 %v632, 7
        %v634 = vsub.s32 2, %v633
        %v635 = vrot.slane %v597, %v634
        %v636 = vadd.f32 %v630, %v635
        %v637 = vadd.f32 %v631, %v635
        %v638 = vpack.c.bf16 %v637, %v636
        %v639 = vld [vmem:[%s520] sm:$0xf]
        %v640 = vld [vmem:[%s520 + $0x4] sm:$0xf]
        %v641 = vld [vmem:[%s520 + $0x8] sm:$0xf]
        %v642 = vld [vmem:[%s520 + $0xc] sm:$0xf]
        %v643 = vld [vmem:[%s438] sm:$0x1]
        %v645 = vlaneseq
        %v646 = vshrl.u32 %v645, 7
        %v647 = vsub.s32 0, %v646
        %v648 = vrot.slane %v643, %v647
        %v654 = vunpack.c.l.b16 %v639
        %v655 = vunpack.c.l.b16 %v640
        %v656 = vunpack.c.l.b16 %v641
        %v657 = vunpack.c.l.b16 %v642
        %v658 = vpack.c.b16 %v655, %v654
        %v659 = vpack.c.b16 %v657, %v656
        %v663 = vsel %vm598, %v638, 0
        %665 = vmatprep.subr.bf16.mxu0 0
        %666 = vmatpush1.bf16.msra.mxu0 %v658
        %667 = vmatprep.subr.bf16.mxu0 0
        %668 = vmatpush1.bf16.msra.mxu0 %v659
        %669 = vmatprep.subr.bf16.mxu0 0
        %670 = vmatpush1.bf16.msra.mxu0 0
        %671 = vmatprep.subr.bf16.mxu0 0
        %672 = vmatpush1.bf16.msra.mxu0 0
        %673 = vmatprep.subr.bf16.mxu0 0
        %674 = vmatpush1.bf16.msra.mxu0 0
        %675 = vmatprep.subr.bf16.mxu0 0
        %676 = vmatpush1.bf16.msra.mxu0 0
        %677 = vmatprep.subr.bf16.mxu0 0
        %678 = vmatpush1.bf16.msra.mxu0 0
        %679 = vmatprep.subr.bf16.mxu0 0
        %680 = vmatpush1.bf16.msra.mxu0 0
        %681 = vmatprep.subr.bf16.mxu0 0
        %682 = vmatpush1.bf16.msra.mxu0 0
        %683 = vmatprep.subr.bf16.mxu0 0
        %684 = vmatpush1.bf16.msra.mxu0 0
        %685 = vmatprep.subr.bf16.mxu0 0
        %686 = vmatpush1.bf16.msra.mxu0 0
        %687 = vmatprep.subr.bf16.mxu0 0
        %688 = vmatpush1.bf16.msra.mxu0 0
        %689 = vmatprep.subr.bf16.mxu0 0
        %690 = vmatpush1.bf16.msra.mxu0 0
        %691 = vmatprep.subr.bf16.mxu0 0
        %692 = vmatpush1.bf16.msra.mxu0 0
        %693 = vmatprep.subr.bf16.mxu0 0
        %694 = vmatpush1.bf16.msra.mxu0 0
        %695 = vmatprep.subr.bf16.mxu0 0
        %696 = vmatpush1.bf16.msra.mxu0 0
        %697 = vmatprep.mubr.bf16.mxu0 0
        %698 = vmatmul.mubr.bf16.gmra.mrb[0].mxu0 %v663
        %v699 = vpop.f32.mrb[0].mxu0
        %v700 = vadd.f32 %v648, %v699
        %v701 = vpop.f32.mrb[0].mxu0
        %v702 = vpop.f32.mrb[0].mxu0
        %v703 = vadd.f32 %v648, %v702
        %v704 = vpop.f32.mrb[0].mxu0
        %705 = vdwg.mxu0
        %v706 = vpack.c.bf16 %v703, %v700
        %v708 = vunpack.c.l.b16 %v706
        %v709 = vunpack.c.h.b16 %v706
        %v710 = vpack.c.b16 %v708, %v708
        %v711 = vpack.c.b16 %v709, %v709
        %712 = vrot.lane.b32.xlu0 %v710, 96
        %v713 = vpop.permute.xlu0 %712
        %vm714 = vcmask 64512
        %v716 = vsel %vm714, %v710, 0
        %v719 = vsel %vm714, %v713, 0
        %721 = vmatprep.subr.bf16.mxu0 0
        %722 = vmatpush1.bf16.xpose.msra.mxu0 %v719
        %723 = vmatprep.subr.bf16.mxu0 0
        %724 = vmatpush1.bf16.xpose.msra.mxu0 0
        %725 = vmatprep.subr.bf16.mxu0 0
        %726 = vmatpush1.bf16.xpose.msra.mxu0 0
        %727 = vmatprep.subr.bf16.mxu0 0
        %728 = vmatpush1.bf16.xpose.msra.mxu0 0
        %729 = vmatprep.subr.bf16.mxu0 0
        %730 = vmatpush1.bf16.xpose.msra.mxu0 0
        %731 = vmatprep.subr.bf16.mxu0 0
        %732 = vmatpush1.bf16.xpose.msra.mxu0 0
        %733 = vmatprep.subr.bf16.mxu0 0
        %734 = vmatpush1.bf16.xpose.msra.mxu0 0
        %735 = vmatprep.subr.bf16.mxu0 0
        %736 = vmatpush1.bf16.xpose.msra.mxu0 0
        %737 = vmatprep.subr.bf16.mxu0 0
        %738 = vmatpush1.bf16.xpose.msra.mxu0 0
        %739 = vmatprep.subr.bf16.mxu0 0
        %740 = vmatpush1.bf16.xpose.msra.mxu0 0
        %741 = vmatprep.subr.bf16.mxu0 0
        %742 = vmatpush1.bf16.xpose.msra.mxu0 0
        %743 = vmatprep.subr.bf16.mxu0 0
        %744 = vmatpush1.bf16.xpose.msra.mxu0 0
        %745 = vmatprep.subr.bf16.mxu0 0
        %746 = vmatpush1.bf16.xpose.msra.mxu0 0
        %747 = vmatprep.subr.bf16.mxu0 0
        %748 = vmatpush1.bf16.xpose.msra.mxu0 0
        %749 = vmatprep.subr.bf16.mxu0 0
        %750 = vmatpush1.bf16.xpose.msra.mxu0 0
        %751 = vmatprep.subr.bf16.mxu0 0
        %752 = vmatpush1.bf16.xpose.msra.mxu0 0
        %753 = vmatprep.mubr.bf16.mxu0 0
        %754 = vmatmul.mubr.bf16.gmra.mrb[0].mxu0 %v716
        %v755 = vpop.f32.mrb[0].mxu0
        %v756 = vadd.f32 0.0, %v755
        %v757 = vpop.f32.mrb[0].mxu0
        %v758 = vpop.f32.mrb[0].mxu0
        %v759 = vpop.f32.mrb[0].mxu0
        %760 = vdwg.mxu0
        %761 = vrot.lane.b32.xlu0 %v711, 96
        %v762 = vpop.permute.xlu0 %761
        %v764 = vsel %vm714, %v711, 0
        %v767 = vsel %vm714, %v762, 0
        %769 = vmatprep.subr.bf16.mxu0 0
        %770 = vmatpush1.bf16.xpose.msra.mxu0 %v767
        %771 = vmatprep.subr.bf16.mxu0 0
        %772 = vmatpush1.bf16.xpose.msra.mxu0 0
        %773 = vmatprep.subr.bf16.mxu0 0
        %774 = vmatpush1.bf16.xpose.msra.mxu0 0
        %775 = vmatprep.subr.bf16.mxu0 0
        %776 = vmatpush1.bf16.xpose.msra.mxu0 0
        %777 = vmatprep.subr.bf16.mxu0 0
        %778 = vmatpush1.bf16.xpose.msra.mxu0 0
        %779 = vmatprep.subr.bf16.mxu0 0
        %780 = vmatpush1.bf16.xpose.msra.mxu0 0
        %781 = vmatprep.subr.bf16.mxu0 0
        %782 = vmatpush1.bf16.xpose.msra.mxu0 0
        %783 = vmatprep.subr.bf16.mxu0 0
        %784 = vmatpush1.bf16.xpose.msra.mxu0 0
        %785 = vmatprep.subr.bf16.mxu0 0
        %786 = vmatpush1.bf16.xpose.msra.mxu0 0
        %787 = vmatprep.subr.bf16.mxu0 0
        %788 = vmatpush1.bf16.xpose.msra.mxu0 0
        %789 = vmatprep.subr.bf16.mxu0 0
        %790 = vmatpush1.bf16.xpose.msra.mxu0 0
        %791 = vmatprep.subr.bf16.mxu0 0
        %792 = vmatpush1.bf16.xpose.msra.mxu0 0
        %793 = vmatprep.subr.bf16.mxu0 0
        %794 = vmatpush1.bf16.xpose.msra.mxu0 0
        %795 = vmatprep.subr.bf16.mxu0 0
        %796 = vmatpush1.bf16.xpose.msra.mxu0 0
        %797 = vmatprep.subr.bf16.mxu0 0
        %798 = vmatpush1.bf16.xpose.msra.mxu0 0
        %799 = vmatprep.subr.bf16.mxu0 0
        %800 = vmatpush1.bf16.xpose.msra.mxu0 0
        %801 = vmatprep.mubr.bf16.mxu0 0
        %802 = vmatmul.mubr.bf16.gmra.mrb[0].mxu0 %v764
        %v803 = vpop.f32.mrb[0].mxu0
        %v804 = vadd.f32 0.0, %v803
        %v805 = vpop.f32.mrb[0].mxu0
        %v806 = vpop.f32.mrb[0].mxu0
        %v807 = vpop.f32.mrb[0].mxu0
        %808 = vdwg.mxu0
        %v809 = vmul.f32 %v756, 0.35355338
        %v810 = vmul.f32 %v804, 0.35355338
        %v811 = vsel %vm714, %v809, -inf
        %812 = vmax.xlane.f32.xlu0 %v811
        %v813 = vpop.xlane.xlu0 %812
        %v814 = vsel %vm714, %v810, -inf
        %815 = vmax.xlane.f32.xlu0 %v814
        %v816 = vpop.xlane.xlu0 %815
        %v817 = vsub.f32 %v809, %v813
        %v818 = vsub.f32 %v810, %v816
        %v819 = vmul.f32 %v817, 1.442695
        %v820 = vpow.pop %v819
        %v821 = vmul.f32 %v818, 1.442695
        %v822 = vpow.pop %v821
        %v823 = vsel %vm714, %v820, 0.0
        %824 = vadd.xlane.f32.xlu0 %v823
        %v825 = vpop.xlane.xlu0 %824
        %v826 = vsel %vm714, %v822, 0.0
        %827 = vadd.xlane.f32.xlu0 %v826
        %v828 = vpop.xlane.xlu0 %827
        %v829 = vrcp.pop %v825
        %v830 = vrcp.pop %v828
        %v831 = vmul.f32 %v820, %v829
        %v832 = vmul.f32 %v822, %v830
        %v833 = vpack.c.bf16 %v831, %v831
        %v834 = vpack.c.bf16 %v832, %v832
        %835 = vrot.lane.b32.xlu0 %v710, 64
        %v836 = vpop.permute.xlu0 %835
        %v838 = vsel %vm714, %v833, 0
        %vm840 = vcmask 1043456
        %v842 = vsel %vm840, %v836, 0
        %844 = vmatprep.subr.bf16.mxu0 0
        %845 = vmatpush1.bf16.msra.mxu0 %v842
        %846 = vmatprep.subr.bf16.mxu0 0
        %847 = vmatpush1.bf16.msra.mxu0 0
        %848 = vmatprep.subr.bf16.mxu0 0
        %849 = vmatpush1.bf16.msra.mxu0 0
        %850 = vmatprep.subr.bf16.mxu0 0
        %851 = vmatpush1.bf16.msra.mxu0 0
        %852 = vmatprep.subr.bf16.mxu0 0
        %853 = vmatpush1.bf16.msra.mxu0 0
        %854 = vmatprep.subr.bf16.mxu0 0
        %855 = vmatpush1.bf16.msra.mxu0 0
        %856 = vmatprep.subr.bf16.mxu0 0
        %857 = vmatpush1.bf16.msra.mxu0 0
        %858 = vmatprep.subr.bf16.mxu0 0
        %859 = vmatpush1.bf16.msra.mxu0 0
        %860 = vmatprep.subr.bf16.mxu0 0
        %861 = vmatpush1.bf16.msra.mxu0 0
        %862 = vmatprep.subr.bf16.mxu0 0
        %863 = vmatpush1.bf16.msra.mxu0 0
        %864 = vmatprep.subr.bf16.mxu0 0
        %865 = vmatpush1.bf16.msra.mxu0 0
        %866 = vmatprep.subr.bf16.mxu0 0
        %867 = vmatpush1.bf16.msra.mxu0 0
        %868 = vmatprep.subr.bf16.mxu0 0
        %869 = vmatpush1.bf16.msra.mxu0 0
        %870 = vmatprep.subr.bf16.mxu0 0
        %871 = vmatpush1.bf16.msra.mxu0 0
        %872 = vmatprep.subr.bf16.mxu0 0
        %873 = vmatpush1.bf16.msra.mxu0 0
        %874 = vmatprep.subr.bf16.mxu0 0
        %875 = vmatpush1.bf16.msra.mxu0 0
        %876 = vmatprep.mubr.bf16.mxu0 0
        %877 = vmatmul.mubr.bf16.gmra.mrb[0].mxu0 %v838
        %v878 = vpop.f32.mrb[0].mxu0
        %v879 = vadd.f32 0.0, %v878
        %v880 = vpop.f32.mrb[0].mxu0
        %v881 = vpop.f32.mrb[0].mxu0
        %v882 = vpop.f32.mrb[0].mxu0
        %883 = vdwg.mxu0
        %884 = vrot.lane.b32.xlu0 %v711, 64
        %v885 = vpop.permute.xlu0 %884
        %v887 = vsel %vm714, %v834, 0
        %v890 = vsel %vm840, %v885, 0
        %892 = vmatprep.subr.bf16.mxu0 0
        %893 = vmatpush1.bf16.msra.mxu0 %v890
        %894 = vmatprep.subr.bf16.mxu0 0
        %895 = vmatpush1.bf16.msra.mxu0 0
        %896 = vmatprep.subr.bf16.mxu0 0
        %897 = vmatpush1.bf16.msra.mxu0 0
        %898 = vmatprep.subr.bf16.mxu0 0
        %899 = vmatpush1.bf16.msra.mxu0 0
        %900 = vmatprep.subr.bf16.mxu0 0
        %901 = vmatpush1.bf16.msra.mxu0 0
        %902 = vmatprep.subr.bf16.mxu0 0
        %903 = vmatpush1.bf16.msra.mxu0 0
        %904 = vmatprep.subr.bf16.mxu0 0
        %905 = vmatpush1.bf16.msra.mxu0 0
        %906 = vmatprep.subr.bf16.mxu0 0
        %907 = vmatpush1.bf16.msra.mxu0 0
        %908 = vmatprep.subr.bf16.mxu0 0
        %909 = vmatpush1.bf16.msra.mxu0 0
        %910 = vmatprep.subr.bf16.mxu0 0
        %911 = vmatpush1.bf16.msra.mxu0 0
        %912 = vmatprep.subr.bf16.mxu0 0
        %913 = vmatpush1.bf16.msra.mxu0 0
        %914 = vmatprep.subr.bf16.mxu0 0
        %915 = vmatpush1.bf16.msra.mxu0 0
        %916 = vmatprep.subr.bf16.mxu0 0
        %917 = vmatpush1.bf16.msra.mxu0 0
        %918 = vmatprep.subr.bf16.mxu0 0
        %919 = vmatpush1.bf16.msra.mxu0 0
        %920 = vmatprep.subr.bf16.mxu0 0
        %921 = vmatpush1.bf16.msra.mxu0 0
        %922 = vmatprep.subr.bf16.mxu0 0
        %923 = vmatpush1.bf16.msra.mxu0 0
        %924 = vmatprep.mubr.bf16.mxu0 0
        %925 = vmatmul.mubr.bf16.gmra.mrb[0].mxu0 %v887
        %v926 = vpop.f32.mrb[0].mxu0
        %v927 = vadd.f32 0.0, %v926
        %v928 = vpop.f32.mrb[0].mxu0
        %v929 = vpop.f32.mrb[0].mxu0
        %v930 = vpop.f32.mrb[0].mxu0
        %931 = vdwg.mxu0
        %v932 = vpack.c.bf16 %v927, %v879
        %933 = vst.msk [vmem:[#allocation2] sm:$0xff] %vm714, %v932
        %934 = vrot.lane.b32.xlu0 %v710, 120
        %v935 = vpop.permute.xlu0 %934
        %936 = vrot.lane.b32.xlu0 %v710, 88
        %v937 = vpop.permute.xlu0 %936
        %v939 = vsel %vm714, %v935, 0
        %v942 = vsel %vm714, %v937, 0
        %944 = vmatprep.subr.bf16.mxu0 0
        %945 = vmatpush1.bf16.xpose.msra.mxu0 %v942
        %946 = vmatprep.subr.bf16.mxu0 0
        %947 = vmatpush1.bf16.xpose.msra.mxu0 0
        %948 = vmatprep.subr.bf16.mxu0 0
        %949 = vmatpush1.bf16.xpose.msra.mxu0 0
        %950 = vmatprep.subr.bf16.mxu0 0
        %951 = vmatpush1.bf16.xpose.msra.mxu0 0
        %952 = vmatprep.subr.bf16.mxu0 0
        %953 = vmatpush1.bf16.xpose.msra.mxu0 0
        %954 = vmatprep.subr.bf16.mxu0 0
        %955 = vmatpush1.bf16.xpose.msra.mxu0 0
        %956 = vmatprep.subr.bf16.mxu0 0
        %957 = vmatpush1.bf16.xpose.msra.mxu0 0
        %958 = vmatprep.subr.bf16.mxu0 0
        %959 = vmatpush1.bf16.xpose.msra.mxu0 0
        %960 = vmatprep.subr.bf16.mxu0 0
        %961 = vmatpush1.bf16.xpose.msra.mxu0 0
        %962 = vmatprep.subr.bf16.mxu0 0
        %963 = vmatpush1.bf16.xpose.msra.mxu0 0
        %964 = vmatprep.subr.bf16.mxu0 0
        %965 = vmatpush1.bf16.xpose.msra.mxu0 0
        %966 = vmatprep.subr.bf16.mxu0 0
        %967 = vmatpush1.bf16.xpose.msra.mxu0 0
        %968 = vmatprep.subr.bf16.mxu0 0
        %969 = vmatpush1.bf16.xpose.msra.mxu0 0
        %970 = vmatprep.subr.bf16.mxu0 0
        %971 = vmatpush1.bf16.xpose.msra.mxu0 0
        %972 = vmatprep.subr.bf16.mxu0 0
        %973 = vmatpush1.bf16.xpose.msra.mxu0 0
        %974 = vmatprep.subr.bf16.mxu0 0
        %975 = vmatpush1.bf16.xpose.msra.mxu0 0
        %976 = vmatprep.mubr.bf16.mxu0 0
        %977 = vmatmul.mubr.bf16.gmra.mrb[0].mxu0 %v939
        %v978 = vpop.f32.mrb[0].mxu0
        %v979 = vadd.f32 0.0, %v978
        %v980 = vpop.f32.mrb[0].mxu0
        %v981 = vpop.f32.mrb[0].mxu0
        %v982 = vpop.f32.mrb[0].mxu0
        %983 = vdwg.mxu0
        %984 = vrot.lane.b32.xlu0 %v711, 120
        %v985 = vpop.permute.xlu0 %984
        %986 = vrot.lane.b32.xlu0 %v711, 88
        %v987 = vpop.permute.xlu0 %986
        %v989 = vsel %vm714, %v985, 0
        %v992 = vsel %vm714, %v987, 0
        %994 = vmatprep.subr.bf16.mxu0 0
        %995 = vmatpush1.bf16.xpose.msra.mxu0 %v992
        %996 = vmatprep.subr.bf16.mxu0 0
        %997 = vmatpush1.bf16.xpose.msra.mxu0 0
        %998 = vmatprep.subr.bf16.mxu0 0
        %999 = vmatpush1.bf16.xpose.msra.mxu0 0
        %1000 = vmatprep.subr.bf16.mxu0 0
        %1001 = vmatpush1.bf16.xpose.msra.mxu0 0
        %1002 = vmatprep.subr.bf16.mxu0 0
        %1003 = vmatpush1.bf16.xpose.msra.mxu0 0
        %1004 = vmatprep.subr.bf16.mxu0 0
        %1005 = vmatpush1.bf16.xpose.msra.mxu0 0
        %1006 = vmatprep.subr.bf16.mxu0 0
        %1007 = vmatpush1.bf16.xpose.msra.mxu0 0
        %1008 = vmatprep.subr.bf16.mxu0 0
        %1009 = vmatpush1.bf16.xpose.msra.mxu0 0
        %1010 = vmatprep.subr.bf16.mxu0 0
        %1011 = vmatpush1.bf16.xpose.msra.mxu0 0
        %1012 = vmatprep.subr.bf16.mxu0 0
        %1013 = vmatpush1.bf16.xpose.msra.mxu0 0
        %1014 = vmatprep.subr.bf16.mxu0 0
        %1015 = vmatpush1.bf16.xpose.msra.mxu0 0
        %1016 = vmatprep.subr.bf16.mxu0 0
        %1017 = vmatpush1.bf16.xpose.msra.mxu0 0
        %1018 = vmatprep.subr.bf16.mxu0 0
        %1019 = vmatpush1.bf16.xpose.msra.mxu0 0
        %1020 = vmatprep.subr.bf16.mxu0 0
        %1021 = vmatpush1.bf16.xpose.msra.mxu0 0
        %1022 = vmatprep.subr.bf16.mxu0 0
        %1023 = vmatpush1.bf16.xpose.msra.mxu0 0
        %1024 = vmatprep.subr.bf16.mxu0 0
        %1025 = vmatpush1.bf16.xpose.msra.mxu0 0
        %1026 = vmatprep.mubr.bf16.mxu0 0
        %1027 = vmatmul.mubr.bf16.gmra.mrb[0].mxu0 %v989
        %v1028 = vpop.f32.mrb[0].mxu0
        %v1029 = vadd.f32 0.0, %v1028
        %v1030 = vpop.f32.mrb[0].mxu0
        %v1031 = vpop.f32.mrb[0].mxu0
        %v1032 = vpop.f32.mrb[0].mxu0
        %1033 = vdwg.mxu0
        %v1034 = vmul.f32 %v979, 0.35355338
        %v1035 = vmul.f32 %v1029, 0.35355338
        %v1036 = vsel %vm714, %v1034, -inf
        %1037 = vmax.xlane.f32.xlu0 %v1036
        %v1038 = vpop.xlane.xlu0 %1037
        %v1039 = vsel %vm714, %v1035, -inf
        %1040 = vmax.xlane.f32.xlu0 %v1039
        %v1041 = vpop.xlane.xlu0 %1040
        %v1042 = vsub.f32 %v1034, %v1038
        %v1043 = vsub.f32 %v1035, %v1041
        %v1044 = vmul.f32 %v1042, 1.442695
        %v1045 = vpow.pop %v1044
        %v1046 = vmul.f32 %v1043, 1.442695
        %v1047 = vpow.pop %v1046
        %v1048 = vsel %vm714, %v1045, 0.0
        %1049 = vadd.xlane.f32.xlu0 %v1048
        %v1050 = vpop.xlane.xlu0 %1049
        %v1051 = vsel %vm714, %v1047, 0.0
        %1052 = vadd.xlane.f32.xlu0 %v1051
        %v1053 = vpop.xlane.xlu0 %1052
        %v1054 = vrcp.pop %v1050
        %v1055 = vrcp.pop %v1053
        %v1056 = vmul.f32 %v1045, %v1054
        %v1057 = vmul.f32 %v1047, %v1055
        %v1058 = vpack.c.bf16 %v1056, %v1056
        %v1059 = vpack.c.bf16 %v1057, %v1057
        %1060 = vrot.lane.b32.xlu0 %v710, 56
        %v1061 = vpop.permute.xlu0 %1060
        %v1063 = vsel %vm714, %v1058, 0
        %v1066 = vsel %vm840, %v1061, 0
        %1068 = vmatprep.subr.bf16.mxu0 0
        %1069 = vmatpush1.bf16.msra.mxu0 %v1066
        %1070 = vmatprep.subr.bf16.mxu0 0
        %1071 = vmatpush1.bf16.msra.mxu0 0
        %1072 = vmatprep.subr.bf16.mxu0 0
        %1073 = vmatpush1.bf16.msra.mxu0 0
        %1074 = vmatprep.subr.bf16.mxu0 0
        %1075 = vmatpush1.bf16.msra.mxu0 0
        %1076 = vmatprep.subr.bf16.mxu0 0
        %1077 = vmatpush1.bf16.msra.mxu0 0
        %1078 = vmatprep.subr.bf16.mxu0 0
        %1079 = vmatpush1.bf16.msra.mxu0 0
        %1080 = vmatprep.subr.bf16.mxu0 0
        %1081 = vmatpush1.bf16.msra.mxu0 0
        %1082 = vmatprep.subr.bf16.mxu0 0
        %1083 = vmatpush1.bf16.msra.mxu0 0
        %1084 = vmatprep.subr.bf16.mxu0 0
        %1085 = vmatpush1.bf16.msra.mxu0 0
        %1086 = vmatprep.subr.bf16.mxu0 0
        %1087 = vmatpush1.bf16.msra.mxu0 0
        %1088 = vmatprep.subr.bf16.mxu0 0
        %1089 = vmatpush1.bf16.msra.mxu0 0
        %1090 = vmatprep.subr.bf16.mxu0 0
        %1091 = vmatpush1.bf16.msra.mxu0 0
        %1092 = vmatprep.subr.bf16.mxu0 0
        %1093 = vmatpush1.bf16.msra.mxu0 0
        %1094 = vmatprep.subr.bf16.mxu0 0
        %1095 = vmatpush1.bf16.msra.mxu0 0
        %1096 = vmatprep.subr.bf16.mxu0 0
        %1097 = vmatpush1.bf16.msra.mxu0 0
        %1098 = vmatprep.subr.bf16.mxu0 0
        %1099 = vmatpush1.bf16.msra.mxu0 0
        %1100 = vmatprep.mubr.bf16.mxu0 0
        %1101 = vmatmul.mubr.bf16.gmra.mrb[0].mxu0 %v1063
        %v1102 = vpop.f32.mrb[0].mxu0
        %v1103 = vadd.f32 0.0, %v1102
        %v1104 = vpop.f32.mrb[0].mxu0
        %v1105 = vpop.f32.mrb[0].mxu0
        %v1106 = vpop.f32.mrb[0].mxu0
        %1107 = vdwg.mxu0
        %1108 = vrot.lane.b32.xlu0 %v711, 56
        %v1109 = vpop.permute.xlu0 %1108
        %v1111 = vsel %vm714, %v1059, 0
        %v1114 = vsel %vm840, %v1109, 0
        %1116 = vmatprep.subr.bf16.mxu0 0
        %1117 = vmatpush1.bf16.msra.mxu0 %v1114
        %1118 = vmatprep.subr.bf16.mxu0 0
        %1119 = vmatpush1.bf16.msra.mxu0 0
        %1120 = vmatprep.subr.bf16.mxu0 0
        %1121 = vmatpush1.bf16.msra.mxu0 0
        %1122 = vmatprep.subr.bf16.mxu0 0
        %1123 = vmatpush1.bf16.msra.mxu0 0
        %1124 = vmatprep.subr.bf16.mxu0 0
        %1125 = vmatpush1.bf16.msra.mxu0 0
        %1126 = vmatprep.subr.bf16.mxu0 0
        %1127 = vmatpush1.bf16.msra.mxu0 0
        %1128 = vmatprep.subr.bf16.mxu0 0
        %1129 = vmatpush1.bf16.msra.mxu0 0
        %1130 = vmatprep.subr.bf16.mxu0 0
        %1131 = vmatpush1.bf16.msra.mxu0 0
        %1132 = vmatprep.subr.bf16.mxu0 0
        %1133 = vmatpush1.bf16.msra.mxu0 0
        %1134 = vmatprep.subr.bf16.mxu0 0
        %1135 = vmatpush1.bf16.msra.mxu0 0
        %1136 = vmatprep.subr.bf16.mxu0 0
        %1137 = vmatpush1.bf16.msra.mxu0 0
        %1138 = vmatprep.subr.bf16.mxu0 0
        %1139 = vmatpush1.bf16.msra.mxu0 0
        %1140 = vmatprep.subr.bf16.mxu0 0
        %1141 = vmatpush1.bf16.msra.mxu0 0
        %1142 = vmatprep.subr.bf16.mxu0 0
        %1143 = vmatpush1.bf16.msra.mxu0 0
        %1144 = vmatprep.subr.bf16.mxu0 0
        %1145 = vmatpush1.bf16.msra.mxu0 0
        %1146 = vmatprep.subr.bf16.mxu0 0
        %1147 = vmatpush1.bf16.msra.mxu0 0
        %1148 = vmatprep.mubr.bf16.mxu0 0
        %1149 = vmatmul.mubr.bf16.gmra.mrb[0].mxu0 %v1111
        %v1150 = vpop.f32.mrb[0].mxu0
        %v1151 = vadd.f32 0.0, %v1150
        %v1152 = vpop.f32.mrb[0].mxu0
        %v1153 = vpop.f32.mrb[0].mxu0
        %v1154 = vpop.f32.mrb[0].mxu0
        %1155 = vdwg.mxu0
        %v1156 = vpack.c.bf16 %v1151, %v1103
        %1158 = vrot.lane.b32.xlu0 %v1156, 8
        %v1159 = vpop.permute.xlu0 %1158
        %vm1161 = vcmask 130112
        %1162 = vst.msk [vmem:[#allocation2] sm:$0xff] %vm1161, %v1159
        %1163 = vrot.lane.b32.xlu0 %v710, 112
        %v1164 = vpop.permute.xlu0 %1163
        %1165 = vrot.lane.b32.xlu0 %v710, 80
        %v1166 = vpop.permute.xlu0 %1165
        %v1168 = vsel %vm714, %v1164, 0
        %v1171 = vsel %vm714, %v1166, 0
        %1173 = vmatprep.subr.bf16.mxu0 0
        %1174 = vmatpush1.bf16.xpose.msra.mxu0 %v1171
        %1175 = vmatprep.subr.bf16.mxu0 0
        %1176 = vmatpush1.bf16.xpose.msra.mxu0 0
        %1177 = vmatprep.subr.bf16.mxu0 0
        %1178 = vmatpush1.bf16.xpose.msra.mxu0 0
        %1179 = vmatprep.subr.bf16.mxu0 0
        %1180 = vmatpush1.bf16.xpose.msra.mxu0 0
        %1181 = vmatprep.subr.bf16.mxu0 0
        %1182 = vmatpush1.bf16.xpose.msra.mxu0 0
        %1183 = vmatprep.subr.bf16.mxu0 0
        %1184 = vmatpush1.bf16.xpose.msra.mxu0 0
        %1185 = vmatprep.subr.bf16.mxu0 0
        %1186 = vmatpush1.bf16.xpose.msra.mxu0 0
        %1187 = vmatprep.subr.bf16.mxu0 0
        %1188 = vmatpush1.bf16.xpose.msra.mxu0 0
        %1189 = vmatprep.subr.bf16.mxu0 0
        %1190 = vmatpush1.bf16.xpose.msra.mxu0 0
        %1191 = vmatprep.subr.bf16.mxu0 0
        %1192 = vmatpush1.bf16.xpose.msra.mxu0 0
        %1193 = vmatprep.subr.bf16.mxu0 0
        %1194 = vmatpush1.bf16.xpose.msra.mxu0 0
        %1195 = vmatprep.subr.bf16.mxu0 0
        %1196 = vmatpush1.bf16.xpose.msra.mxu0 0
        %1197 = vmatprep.subr.bf16.mxu0 0
        %1198 = vmatpush1.bf16.xpose.msra.mxu0 0
        %1199 = vmatprep.subr.bf16.mxu0 0
        %1200 = vmatpush1.bf16.xpose.msra.mxu0 0
        %1201 = vmatprep.subr.bf16.mxu0 0
        %1202 = vmatpush1.bf16.xpose.msra.mxu0 0
        %1203 = vmatprep.subr.bf16.mxu0 0
        %1204 = vmatpush1.bf16.xpose.msra.mxu0 0
        %1205 = vmatprep.mubr.bf16.mxu0 0
        %1206 = vmatmul.mubr.bf16.gmra.mrb[0].mxu0 %v1168
        %v1207 = vpop.f32.mrb[0].mxu0
        %v1208 = vadd.f32 0.0, %v1207
        %v1209 = vpop.f32.mrb[0].mxu0
        %v1210 = vpop.f32.mrb[0].mxu0
        %v1211 = vpop.f32.mrb[0].mxu0
        %1212 = vdwg.mxu0
        %1213 = vrot.lane.b32.xlu0 %v711, 112
        %v1214 = vpop.permute.xlu0 %1213
        %1215 = vrot.lane.b32.xlu0 %v711, 80
        %v1216 = vpop.permute.xlu0 %1215
        %v1218 = vsel %vm714, %v1214, 0
        %v1221 = vsel %vm714, %v1216, 0
        %1223 = vmatprep.subr.bf16.mxu0 0
        %1224 = vmatpush1.bf16.xpose.msra.mxu0 %v1221
        %1225 = vmatprep.subr.bf16.mxu0 0
        %1226 = vmatpush1.bf16.xpose.msra.mxu0 0
        %1227 = vmatprep.subr.bf16.mxu0 0
        %1228 = vmatpush1.bf16.xpose.msra.mxu0 0
        %1229 = vmatprep.subr.bf16.mxu0 0
        %1230 = vmatpush1.bf16.xpose.msra.mxu0 0
        %1231 = vmatprep.subr.bf16.mxu0 0
        %1232 = vmatpush1.bf16.xpose.msra.mxu0 0
        %1233 = vmatprep.subr.bf16.mxu0 0
        %1234 = vmatpush1.bf16.xpose.msra.mxu0 0
        %1235 = vmatprep.subr.bf16.mxu0 0
        %1236 = vmatpush1.bf16.xpose.msra.mxu0 0
        %1237 = vmatprep.subr.bf16.mxu0 0
        %1238 = vmatpush1.bf16.xpose.msra.mxu0 0
        %1239 = vmatprep.subr.bf16.mxu0 0
        %1240 = vmatpush1.bf16.xpose.msra.mxu0 0
        %1241 = vmatprep.subr.bf16.mxu0 0
        %1242 = vmatpush1.bf16.xpose.msra.mxu0 0
        %1243 = vmatprep.subr.bf16.mxu0 0
        %1244 = vmatpush1.bf16.xpose.msra.mxu0 0
        %1245 = vmatprep.subr.bf16.mxu0 0
        %1246 = vmatpush1.bf16.xpose.msra.mxu0 0
        %1247 = vmatprep.subr.bf16.mxu0 0
        %1248 = vmatpush1.bf16.xpose.msra.mxu0 0
        %1249 = vmatprep.subr.bf16.mxu0 0
        %1250 = vmatpush1.bf16.xpose.msra.mxu0 0
        %1251 = vmatprep.subr.bf16.mxu0 0
        %1252 = vmatpush1.bf16.xpose.msra.mxu0 0
        %1253 = vmatprep.subr.bf16.mxu0 0
        %1254 = vmatpush1.bf16.xpose.msra.mxu0 0
        %1255 = vmatprep.mubr.bf16.mxu0 0
        %1256 = vmatmul.mubr.bf16.gmra.mrb[0].mxu0 %v1218
        %v1257 = vpop.f32.mrb[0].mxu0
        %v1258 = vadd.f32 0.0, %v1257
        %v1259 = vpop.f32.mrb[0].mxu0
        %v1260 = vpop.f32.mrb[0].mxu0
        %v1261 = vpop.f32.mrb[0].mxu0
        %1262 = vdwg.mxu0
        %v1263 = vmul.f32 %v1208, 0.35355338
        %v1264 = vmul.f32 %v1258, 0.35355338
        %v1265 = vsel %vm714, %v1263, -inf
        %1266 = vmax.xlane.f32.xlu0 %v1265
        %v1267 = vpop.xlane.xlu0 %1266
        %v1268 = vsel %vm714, %v1264, -inf
        %1269 = vmax.xlane.f32.xlu0 %v1268
        %v1270 = vpop.xlane.xlu0 %1269
        %v1271 = vsub.f32 %v1263, %v1267
        %v1272 = vsub.f32 %v1264, %v1270
        %v1273 = vmul.f32 %v1271, 1.442695
        %v1274 = vpow.pop %v1273
        %v1275 = vmul.f32 %v1272, 1.442695
        %v1276 = vpow.pop %v1275
        %v1277 = vsel %vm714, %v1274, 0.0
        %1278 = vadd.xlane.f32.xlu0 %v1277
        %v1279 = vpop.xlane.xlu0 %1278
        %v1280 = vsel %vm714, %v1276, 0.0
        %1281 = vadd.xlane.f32.xlu0 %v1280
        %v1282 = vpop.xlane.xlu0 %1281
        %v1283 = vrcp.pop %v1279
        %v1284 = vrcp.pop %v1282
        %v1285 = vmul.f32 %v1274, %v1283
        %v1286 = vmul.f32 %v1276, %v1284
        %v1287 = vpack.c.bf16 %v1285, %v1285
        %v1288 = vpack.c.bf16 %v1286, %v1286
        %1289 = vrot.lane.b32.xlu0 %v710, 48
        %v1290 = vpop.permute.xlu0 %1289
        %v1292 = vsel %vm714, %v1287, 0
        %v1295 = vsel %vm840, %v1290, 0
        %1297 = vmatprep.subr.bf16.mxu0 0
        %1298 = vmatpush1.bf16.msra.mxu0 %v1295
        %1299 = vmatprep.subr.bf16.mxu0 0
        %1300 = vmatpush1.bf16.msra.mxu0 0
        %1301 = vmatprep.subr.bf16.mxu0 0
        %1302 = vmatpush1.bf16.msra.mxu0 0
        %1303 = vmatprep.subr.bf16.mxu0 0
        %1304 = vmatpush1.bf16.msra.mxu0 0
        %1305 = vmatprep.subr.bf16.mxu0 0
        %1306 = vmatpush1.bf16.msra.mxu0 0
        %1307 = vmatprep.subr.bf16.mxu0 0
        %1308 = vmatpush1.bf16.msra.mxu0 0
        %1309 = vmatprep.subr.bf16.mxu0 0
        %1310 = vmatpush1.bf16.msra.mxu0 0
        %1311 = vmatprep.subr.bf16.mxu0 0
        %1312 = vmatpush1.bf16.msra.mxu0 0
        %1313 = vmatprep.subr.bf16.mxu0 0
        %1314 = vmatpush1.bf16.msra.mxu0 0
        %1315 = vmatprep.subr.bf16.mxu0 0
        %1316 = vmatpush1.bf16.msra.mxu0 0
        %1317 = vmatprep.subr.bf16.mxu0 0
        %1318 = vmatpush1.bf16.msra.mxu0 0
        %1319 = vmatprep.subr.bf16.mxu0 0
        %1320 = vmatpush1.bf16.msra.mxu0 0
        %1321 = vmatprep.subr.bf16.mxu0 0
        %1322 = vmatpush1.bf16.msra.mxu0 0
        %1323 = vmatprep.subr.bf16.mxu0 0
        %1324 = vmatpush1.bf16.msra.mxu0 0
        %1325 = vmatprep.subr.bf16.mxu0 0
        %1326 = vmatpush1.bf16.msra.mxu0 0
        %1327 = vmatprep.subr.bf16.mxu0 0
        %1328 = vmatpush1.bf16.msra.mxu0 0
        %1329 = vmatprep.mubr.bf16.mxu0 0
        %1330 = vmatmul.mubr.bf16.gmra.mrb[0].mxu0 %v1292
        %v1331 = vpop.f32.mrb[0].mxu0
        %v1332 = vadd.f32 0.0, %v1331
        %v1333 = vpop.f32.mrb[0].mxu0
        %v1334 = vpop.f32.mrb[0].mxu0
        %v1335 = vpop.f32.mrb[0].mxu0
        %1336 = vdwg.mxu0
        %1337 = vrot.lane.b32.xlu0 %v711, 48
        %v1338 = vpop.permute.xlu0 %1337
        %v1340 = vsel %vm714, %v1288, 0
        %v1343 = vsel %vm840, %v1338, 0
        %1345 = vmatprep.subr.bf16.mxu0 0
        %1346 = vmatpush1.bf16.msra.mxu0 %v1343
        %1347 = vmatprep.subr.bf16.mxu0 0
        %1348 = vmatpush1.bf16.msra.mxu0 0
        %1349 = vmatprep.subr.bf16.mxu0 0
        %1350 = vmatpush1.bf16.msra.mxu0 0
        %1351 = vmatprep.subr.bf16.mxu0 0
        %1352 = vmatpush1.bf16.msra.mxu0 0
        %1353 = vmatprep.subr.bf16.mxu0 0
        %1354 = vmatpush1.bf16.msra.mxu0 0
        %1355 = vmatprep.subr.bf16.mxu0 0
        %1356 = vmatpush1.bf16.msra.mxu0 0
        %1357 = vmatprep.subr.bf16.mxu0 0
        %1358 = vmatpush1.bf16.msra.mxu0 0
        %1359 = vmatprep.subr.bf16.mxu0 0
        %1360 = vmatpush1.bf16.msra.mxu0 0
        %1361 = vmatprep.subr.bf16.mxu0 0
        %1362 = vmatpush1.bf16.msra.mxu0 0
        %1363 = vmatprep.subr.bf16.mxu0 0
        %1364 = vmatpush1.bf16.msra.mxu0 0
        %1365 = vmatprep.subr.bf16.mxu0 0
        %1366 = vmatpush1.bf16.msra.mxu0 0
        %1367 = vmatprep.subr.bf16.mxu0 0
        %1368 = vmatpush1.bf16.msra.mxu0 0
        %1369 = vmatprep.subr.bf16.mxu0 0
        %1370 = vmatpush1.bf16.msra.mxu0 0
        %1371 = vmatprep.subr.bf16.mxu0 0
        %1372 = vmatpush1.bf16.msra.mxu0 0
        %1373 = vmatprep.subr.bf16.mxu0 0
        %1374 = vmatpush1.bf16.msra.mxu0 0
        %1375 = vmatprep.subr.bf16.mxu0 0
        %1376 = vmatpush1.bf16.msra.mxu0 0
        %1377 = vmatprep.mubr.bf16.mxu0 0
        %1378 = vmatmul.mubr.bf16.gmra.mrb[0].mxu0 %v1340
        %v1379 = vpop.f32.mrb[0].mxu0
        %v1380 = vadd.f32 0.0, %v1379
        %v1381 = vpop.f32.mrb[0].mxu0
        %v1382 = vpop.f32.mrb[0].mxu0
        %v1383 = vpop.f32.mrb[0].mxu0
        %1384 = vdwg.mxu0
        %v1385 = vpack.c.bf16 %v1380, %v1332
        %1387 = vrot.lane.b32.xlu0 %v1385, 16
        %v1388 = vpop.permute.xlu0 %1387
        %vm1390 = vcmask 195712
        %1391 = vst.msk [vmem:[#allocation2] sm:$0xff] %vm1390, %v1388
        %1392 = vrot.lane.b32.xlu0 %v710, 104
        %v1393 = vpop.permute.xlu0 %1392
        %1394 = vrot.lane.b32.xlu0 %v710, 72
        %v1395 = vpop.permute.xlu0 %1394
        %v1397 = vsel %vm714, %v1393, 0
        %v1400 = vsel %vm714, %v1395, 0
        %1402 = vmatprep.subr.bf16.mxu0 0
        %1403 = vmatpush1.bf16.xpose.msra.mxu0 %v1400
        %1404 = vmatprep.subr.bf16.mxu0 0
        %1405 = vmatpush1.bf16.xpose.msra.mxu0 0
        %1406 = vmatprep.subr.bf16.mxu0 0
        %1407 = vmatpush1.bf16.xpose.msra.mxu0 0
        %1408 = vmatprep.subr.bf16.mxu0 0
        %1409 = vmatpush1.bf16.xpose.msra.mxu0 0
        %1410 = vmatprep.subr.bf16.mxu0 0
        %1411 = vmatpush1.bf16.xpose.msra.mxu0 0
        %1412 = vmatprep.subr.bf16.mxu0 0
        %1413 = vmatpush1.bf16.xpose.msra.mxu0 0
        %1414 = vmatprep.subr.bf16.mxu0 0
        %1415 = vmatpush1.bf16.xpose.msra.mxu0 0
        %1416 = vmatprep.subr.bf16.mxu0 0
        %1417 = vmatpush1.bf16.xpose.msra.mxu0 0
        %1418 = vmatprep.subr.bf16.mxu0 0
        %1419 = vmatpush1.bf16.xpose.msra.mxu0 0
        %1420 = vmatprep.subr.bf16.mxu0 0
        %1421 = vmatpush1.bf16.xpose.msra.mxu0 0
        %1422 = vmatprep.subr.bf16.mxu0 0
        %1423 = vmatpush1.bf16.xpose.msra.mxu0 0
        %1424 = vmatprep.subr.bf16.mxu0 0
        %1425 = vmatpush1.bf16.xpose.msra.mxu0 0
        %1426 = vmatprep.subr.bf16.mxu0 0
        %1427 = vmatpush1.bf16.xpose.msra.mxu0 0
        %1428 = vmatprep.subr.bf16.mxu0 0
        %1429 = vmatpush1.bf16.xpose.msra.mxu0 0
        %1430 = vmatprep.subr.bf16.mxu0 0
        %1431 = vmatpush1.bf16.xpose.msra.mxu0 0
        %1432 = vmatprep.subr.bf16.mxu0 0
        %1433 = vmatpush1.bf16.xpose.msra.mxu0 0
        %1434 = vmatprep.mubr.bf16.mxu0 0
        %1435 = vmatmul.mubr.bf16.gmra.mrb[0].mxu0 %v1397
        %v1436 = vpop.f32.mrb[0].mxu0
        %v1437 = vadd.f32 0.0, %v1436
        %v1438 = vpop.f32.mrb[0].mxu0
        %v1439 = vpop.f32.mrb[0].mxu0
        %v1440 = vpop.f32.mrb[0].mxu0
        %1441 = vdwg.mxu0
        %1442 = vrot.lane.b32.xlu0 %v711, 104
        %v1443 = vpop.permute.xlu0 %1442
        %1444 = vrot.lane.b32.xlu0 %v711, 72
        %v1445 = vpop.permute.xlu0 %1444
        %v1447 = vsel %vm714, %v1443, 0
        %v1450 = vsel %vm714, %v1445, 0
        %1452 = vmatprep.subr.bf16.mxu0 0
        %1453 = vmatpush1.bf16.xpose.msra.mxu0 %v1450
        %1454 = vmatprep.subr.bf16.mxu0 0
        %1455 = vmatpush1.bf16.xpose.msra.mxu0 0
        %1456 = vmatprep.subr.bf16.mxu0 0
        %1457 = vmatpush1.bf16.xpose.msra.mxu0 0
        %1458 = vmatprep.subr.bf16.mxu0 0
        %1459 = vmatpush1.bf16.xpose.msra.mxu0 0
        %1460 = vmatprep.subr.bf16.mxu0 0
        %1461 = vmatpush1.bf16.xpose.msra.mxu0 0
        %1462 = vmatprep.subr.bf16.mxu0 0
        %1463 = vmatpush1.bf16.xpose.msra.mxu0 0
        %1464 = vmatprep.subr.bf16.mxu0 0
        %1465 = vmatpush1.bf16.xpose.msra.mxu0 0
        %1466 = vmatprep.subr.bf16.mxu0 0
        %1467 = vmatpush1.bf16.xpose.msra.mxu0 0
        %1468 = vmatprep.subr.bf16.mxu0 0
        %1469 = vmatpush1.bf16.xpose.msra.mxu0 0
        %1470 = vmatprep.subr.bf16.mxu0 0
        %1471 = vmatpush1.bf16.xpose.msra.mxu0 0
        %1472 = vmatprep.subr.bf16.mxu0 0
        %1473 = vmatpush1.bf16.xpose.msra.mxu0 0
        %1474 = vmatprep.subr.bf16.mxu0 0
        %1475 = vmatpush1.bf16.xpose.msra.mxu0 0
        %1476 = vmatprep.subr.bf16.mxu0 0
        %1477 = vmatpush1.bf16.xpose.msra.mxu0 0
        %1478 = vmatprep.subr.bf16.mxu0 0
        %1479 = vmatpush1.bf16.xpose.msra.mxu0 0
        %1480 = vmatprep.subr.bf16.mxu0 0
        %1481 = vmatpush1.bf16.xpose.msra.mxu0 0
        %1482 = vmatprep.subr.bf16.mxu0 0
        %1483 = vmatpush1.bf16.xpose.msra.mxu0 0
        %1484 = vmatprep.mubr.bf16.mxu0 0
        %1485 = vmatmul.mubr.bf16.gmra.mrb[0].mxu0 %v1447
        %v1486 = vpop.f32.mrb[0].mxu0
        %v1487 = vadd.f32 0.0, %v1486
        %v1488 = vpop.f32.mrb[0].mxu0
        %v1489 = vpop.f32.mrb[0].mxu0
        %v1490 = vpop.f32.mrb[0].mxu0
        %1491 = vdwg.mxu0
        %v1492 = vmul.f32 %v1437, 0.35355338
        %v1493 = vmul.f32 %v1487, 0.35355338
        %v1494 = vsel %vm714, %v1492, -inf
        %1495 = vmax.xlane.f32.xlu0 %v1494
        %v1496 = vpop.xlane.xlu0 %1495
        %v1497 = vsel %vm714, %v1493, -inf
        %1498 = vmax.xlane.f32.xlu0 %v1497
        %v1499 = vpop.xlane.xlu0 %1498
        %v1500 = vsub.f32 %v1492, %v1496
        %v1501 = vsub.f32 %v1493, %v1499
        %v1502 = vmul.f32 %v1500, 1.442695
        %v1503 = vpow.pop %v1502
        %v1504 = vmul.f32 %v1501, 1.442695
        %v1505 = vpow.pop %v1504
        %v1506 = vsel %vm714, %v1503, 0.0
        %1507 = vadd.xlane.f32.xlu0 %v1506
        %v1508 = vpop.xlane.xlu0 %1507
        %v1509 = vsel %vm714, %v1505, 0.0
        %1510 = vadd.xlane.f32.xlu0 %v1509
        %v1511 = vpop.xlane.xlu0 %1510
        %v1512 = vrcp.pop %v1508
        %v1513 = vrcp.pop %v1511
        %v1514 = vmul.f32 %v1503, %v1512
        %v1515 = vmul.f32 %v1505, %v1513
        %v1516 = vpack.c.bf16 %v1514, %v1514
        %v1517 = vpack.c.bf16 %v1515, %v1515
        %1518 = vrot.lane.b32.xlu0 %v710, 40
        %v1519 = vpop.permute.xlu0 %1518
        %v1521 = vsel %vm714, %v1516, 0
        %v1524 = vsel %vm840, %v1519, 0
        %1526 = vmatprep.subr.bf16.mxu0 0
        %1527 = vmatpush1.bf16.msra.mxu0 %v1524
        %1528 = vmatprep.subr.bf16.mxu0 0
        %1529 = vmatpush1.bf16.msra.mxu0 0
        %1530 = vmatprep.subr.bf16.mxu0 0
        %1531 = vmatpush1.bf16.msra.mxu0 0
        %1532 = vmatprep.subr.bf16.mxu0 0
        %1533 = vmatpush1.bf16.msra.mxu0 0
        %1534 = vmatprep.subr.bf16.mxu0 0
        %1535 = vmatpush1.bf16.msra.mxu0 0
        %1536 = vmatprep.subr.bf16.mxu0 0
        %1537 = vmatpush1.bf16.msra.mxu0 0
        %1538 = vmatprep.subr.bf16.mxu0 0
        %1539 = vmatpush1.bf16.msra.mxu0 0
        %1540 = vmatprep.subr.bf16.mxu0 0
        %1541 = vmatpush1.bf16.msra.mxu0 0
        %1542 = vmatprep.subr.bf16.mxu0 0
        %1543 = vmatpush1.bf16.msra.mxu0 0
        %1544 = vmatprep.subr.bf16.mxu0 0
        %1545 = vmatpush1.bf16.msra.mxu0 0
        %1546 = vmatprep.subr.bf16.mxu0 0
        %1547 = vmatpush1.bf16.msra.mxu0 0
        %1548 = vmatprep.subr.bf16.mxu0 0
        %1549 = vmatpush1.bf16.msra.mxu0 0
        %1550 = vmatprep.subr.bf16.mxu0 0
        %1551 = vmatpush1.bf16.msra.mxu0 0
        %1552 = vmatprep.subr.bf16.mxu0 0
        %1553 = vmatpush1.bf16.msra.mxu0 0
        %1554 = vmatprep.subr.bf16.mxu0 0
        %1555 = vmatpush1.bf16.msra.mxu0 0
        %1556 = vmatprep.subr.bf16.mxu0 0
        %1557 = vmatpush1.bf16.msra.mxu0 0
        %1558 = vmatprep.mubr.bf16.mxu0 0
        %1559 = vmatmul.mubr.bf16.gmra.mrb[0].mxu0 %v1521
        %v1560 = vpop.f32.mrb[0].mxu0
        %v1561 = vadd.f32 0.0, %v1560
        %v1562 = vpop.f32.mrb[0].mxu0
        %v1563 = vpop.f32.mrb[0].mxu0
        %v1564 = vpop.f32.mrb[0].mxu0
        %1565 = vdwg.mxu0
        %1566 = vrot.lane.b32.xlu0 %v711, 40
        %v1567 = vpop.permute.xlu0 %1566
        %v1569 = vsel %vm714, %v1517, 0
        %v1572 = vsel %vm840, %v1567, 0
        %1574 = vmatprep.subr.bf16.mxu0 0
        %1575 = vmatpush1.bf16.msra.mxu0 %v1572
        %1576 = vmatprep.subr.bf16.mxu0 0
        %1577 = vmatpush1.bf16.msra.mxu0 0
        %1578 = vmatprep.subr.bf16.mxu0 0
        %1579 = vmatpush1.bf16.msra.mxu0 0
        %1580 = vmatprep.subr.bf16.mxu0 0
        %1581 = vmatpush1.bf16.msra.mxu0 0
        %1582 = vmatprep.subr.bf16.mxu0 0
        %1583 = vmatpush1.bf16.msra.mxu0 0
        %1584 = vmatprep.subr.bf16.mxu0 0
        %1585 = vmatpush1.bf16.msra.mxu0 0
        %1586 = vmatprep.subr.bf16.mxu0 0
        %1587 = vmatpush1.bf16.msra.mxu0 0
        %1588 = vmatprep.subr.bf16.mxu0 0
        %1589 = vmatpush1.bf16.msra.mxu0 0
        %1590 = vmatprep.subr.bf16.mxu0 0
        %1591 = vmatpush1.bf16.msra.mxu0 0
        %1592 = vmatprep.subr.bf16.mxu0 0
        %1593 = vmatpush1.bf16.msra.mxu0 0
        %1594 = vmatprep.subr.bf16.mxu0 0
        %1595 = vmatpush1.bf16.msra.mxu0 0
        %1596 = vmatprep.subr.bf16.mxu0 0
        %1597 = vmatpush1.bf16.msra.mxu0 0
        %1598 = vmatprep.subr.bf16.mxu0 0
        %1599 = vmatpush1.bf16.msra.mxu0 0
        %1600 = vmatprep.subr.bf16.mxu0 0
        %1601 = vmatpush1.bf16.msra.mxu0 0
        %1602 = vmatprep.subr.bf16.mxu0 0
        %1603 = vmatpush1.bf16.msra.mxu0 0
        %1604 = vmatprep.subr.bf16.mxu0 0
        %1605 = vmatpush1.bf16.msra.mxu0 0
        %1606 = vmatprep.mubr.bf16.mxu0 0
        %1607 = vmatmul.mubr.bf16.gmra.mrb[0].mxu0 %v1569
        %v1608 = vpop.f32.mrb[0].mxu0
        %v1609 = vadd.f32 0.0, %v1608
        %v1610 = vpop.f32.mrb[0].mxu0
        %v1611 = vpop.f32.mrb[0].mxu0
        %v1612 = vpop.f32.mrb[0].mxu0
        %1613 = vdwg.mxu0
        %v1614 = vpack.c.bf16 %v1609, %v1561
        %1616 = vrot.lane.b32.xlu0 %v1614, 24
        %v1617 = vpop.permute.xlu0 %1616
        %vm1619 = vcmask 261312
        %1620 = vst.msk [vmem:[#allocation2] sm:$0xff] %vm1619, %v1617
        %v1621 = vlaneseq
        %v1622 = vshrl.u32 %v1621, 7
        %v1623 = vsub.s32 0, %v1622
        %v1624 = vrot.slane %v597, %v1623
        %v1625 = vadd.f32 %v595, %v1624
        %v1626 = vadd.f32 %v596, %v1624
        %v1627 = vld [vmem:[#allocation2] sm:$0xff]
        %v1628 = vld [vmem:[%s525] sm:$0xf]
        %v1629 = vld [vmem:[%s525 + $0x4] sm:$0xf]
        %v1630 = vld [vmem:[%s525 + $0x8] sm:$0xf]
        %v1631 = vld [vmem:[%s525 + $0xc] sm:$0xf]
        %v1636 = vunpack.c.l.b16 %v1628
        %v1637 = vunpack.c.l.b16 %v1629
        %v1638 = vunpack.c.l.b16 %v1630
        %v1639 = vunpack.c.l.b16 %v1631
        %v1640 = vpack.c.b16 %v1637, %v1636
        %v1641 = vpack.c.b16 %v1639, %v1638
        %v1645 = vsel %vm598, %v1627, 0
        %1647 = vmatprep.subr.bf16.mxu0 0
        %1648 = vmatpush1.bf16.msra.mxu0 %v1640
        %1649 = vmatprep.subr.bf16.mxu0 0
        %1650 = vmatpush1.bf16.msra.mxu0 %v1641
        %1651 = vmatprep.subr.bf16.mxu0 0
        %1652 = vmatpush1.bf16.msra.mxu0 0
        %1653 = vmatprep.subr.bf16.mxu0 0
        %1654 = vmatpush1.bf16.msra.mxu0 0
        %1655 = vmatprep.subr.bf16.mxu0 0
        %1656 = vmatpush1.bf16.msra.mxu0 0
        %1657 = vmatprep.subr.bf16.mxu0 0
        %1658 = vmatpush1.bf16.msra.mxu0 0
        %1659 = vmatprep.subr.bf16.mxu0 0
        %1660 = vmatpush1.bf16.msra.mxu0 0
        %1661 = vmatprep.subr.bf16.mxu0 0
        %1662 = vmatpush1.bf16.msra.mxu0 0
        %1663 = vmatprep.subr.bf16.mxu0 0
        %1664 = vmatpush1.bf16.msra.mxu0 0
        %1665 = vmatprep.subr.bf16.mxu0 0
        %1666 = vmatpush1.bf16.msra.mxu0 0
        %1667 = vmatprep.subr.bf16.mxu0 0
        %1668 = vmatpush1.bf16.msra.mxu0 0
        %1669 = vmatprep.subr.bf16.mxu0 0
        %1670 = vmatpush1.bf16.msra.mxu0 0
        %1671 = vmatprep.subr.bf16.mxu0 0
        %1672 = vmatpush1.bf16.msra.mxu0 0
        %1673 = vmatprep.subr.bf16.mxu0 0
        %1674 = vmatpush1.bf16.msra.mxu0 0
        %1675 = vmatprep.subr.bf16.mxu0 0
        %1676 = vmatpush1.bf16.msra.mxu0 0
        %1677 = vmatprep.subr.bf16.mxu0 0
        %1678 = vmatpush1.bf16.msra.mxu0 0
        %1679 = vmatprep.mubr.bf16.mxu0 0
        %1680 = vmatmul.mubr.bf16.gmra.mrb[0].mxu0 %v1645
        %v1681 = vpop.f32.mrb[0].mxu0
        %v1682 = vadd.f32 0.0, %v1681
        %v1683 = vpop.f32.mrb[0].mxu0
        %v1684 = vpop.f32.mrb[0].mxu0
        %v1685 = vadd.f32 0.0, %v1684
        %v1686 = vpop.f32.mrb[0].mxu0
        %1687 = vdwg.mxu0
        %v1688 = vadd.f32 %v1625, %v1682
        %v1689 = vadd.f32 %v1626, %v1685
        %v1690 = vsel %vm598, %v1688, 0.0
        %1691 = vadd.xlane.f32.xlu0 %v1690
        %v1692 = vpop.xlane.xlu0 %1691
        %v1693 = vsel %vm598, %v1689, 0.0
        %1694 = vadd.xlane.f32.xlu0 %v1693
        %v1695 = vpop.xlane.xlu0 %1694
        %v1696 = vmul.f32 %v1692, %v605
        %v1697 = vmul.f32 %v1695, %v605
        %v1698 = vsub.f32 %v1688, %v1696
        %v1699 = vsub.f32 %v1689, %v1697
        %v1700 = vmul.f32 %v1698, %v1698
        %v1701 = vmul.f32 %v1699, %v1699
        %v1702 = vsel %vm598, %v1700, 0.0
        %1703 = vadd.xlane.f32.xlu0 %v1702
        %v1704 = vpop.xlane.xlu0 %1703
        %v1705 = vsel %vm598, %v1701, 0.0
        %1706 = vadd.xlane.f32.xlu0 %v1705
        %v1707 = vpop.xlane.xlu0 %1706
        %v1708 = vmul.f32 %v1704, %v605
        %v1709 = vmul.f32 %v1707, %v605
        %v1710 = vadd.f32 %v1708, 1e-05
        %v1711 = vadd.f32 %v1709, 1e-05
        %v1712 = vrsqrt.pop %v1710
        %v1713 = vrsqrt.pop %v1711
        %v1714 = vmul.f32 %v1698, %v1712
        %v1715 = vmul.f32 %v1699, %v1713
        %v1716 = vlaneseq
        %v1717 = vshrl.u32 %v1716, 7
        %v1718 = vsub.s32 3, %v1717
        %v1719 = vrot.slane %v597, %v1718
        %v1720 = vmul.f32 %v1714, %v1719
        %v1721 = vmul.f32 %v1715, %v1719
        %v1722 = vlaneseq
        %v1723 = vshrl.u32 %v1722, 7
        %v1724 = vsub.s32 4, %v1723
        %v1725 = vrot.slane %v597, %v1724
        %v1726 = vadd.f32 %v1720, %v1725
        %v1727 = vadd.f32 %v1721, %v1725
        %v1728 = vpack.c.bf16 %v1727, %v1726
        %v1729 = vld [vmem:[%s530] sm:$0xf]
        %v1730 = vld [vmem:[%s530 + $0x4] sm:$0xf]
        %v1731 = vld [vmem:[%s530 + $0x8] sm:$0xf]
        %v1732 = vld [vmem:[%s530 + $0xc] sm:$0xf]
        %v1733 = vld [vmem:[%s446] sm:$0x1]
        %v1735 = vlaneseq
        %v1736 = vshrl.u32 %v1735, 7
        %v1737 = vsub.s32 0, %v1736
        %v1738 = vrot.slane %v1733, %v1737
        %v1744 = vunpack.c.l.b16 %v1729
        %v1745 = vunpack.c.l.b16 %v1730
        %v1746 = vunpack.c.l.b16 %v1731
        %v1747 = vunpack.c.l.b16 %v1732
        %v1748 = vpack.c.b16 %v1745, %v1744
        %v1749 = vpack.c.b16 %v1747, %v1746
        %v1753 = vsel %vm598, %v1728, 0
        %1755 = vmatprep.subr.bf16.mxu0 0
        %1756 = vmatpush1.bf16.msra.mxu0 %v1748
        %1757 = vmatprep.subr.bf16.mxu0 0
        %1758 = vmatpush1.bf16.msra.mxu0 %v1749
        %1759 = vmatprep.subr.bf16.mxu0 0
        %1760 = vmatpush1.bf16.msra.mxu0 0
        %1761 = vmatprep.subr.bf16.mxu0 0
        %1762 = vmatpush1.bf16.msra.mxu0 0
        %1763 = vmatprep.subr.bf16.mxu0 0
        %1764 = vmatpush1.bf16.msra.mxu0 0
        %1765 = vmatprep.subr.bf16.mxu0 0
        %1766 = vmatpush1.bf16.msra.mxu0 0
        %1767 = vmatprep.subr.bf16.mxu0 0
        %1768 = vmatpush1.bf16.msra.mxu0 0
        %1769 = vmatprep.subr.bf16.mxu0 0
        %1770 = vmatpush1.bf16.msra.mxu0 0
        %1771 = vmatprep.subr.bf16.mxu0 0
        %1772 = vmatpush1.bf16.msra.mxu0 0
        %1773 = vmatprep.subr.bf16.mxu0 0
        %1774 = vmatpush1.bf16.msra.mxu0 0
        %1775 = vmatprep.subr.bf16.mxu0 0
        %1776 = vmatpush1.bf16.msra.mxu0 0
        %1777 = vmatprep.subr.bf16.mxu0 0
        %1778 = vmatpush1.bf16.msra.mxu0 0
        %1779 = vmatprep.subr.bf16.mxu0 0
        %1780 = vmatpush1.bf16.msra.mxu0 0
        %1781 = vmatprep.subr.bf16.mxu0 0
        %1782 = vmatpush1.bf16.msra.mxu0 0
        %1783 = vmatprep.subr.bf16.mxu0 0
        %1784 = vmatpush1.bf16.msra.mxu0 0
        %1785 = vmatprep.subr.bf16.mxu0 0
        %1786 = vmatpush1.bf16.msra.mxu0 0
        %1787 = vmatprep.mubr.bf16.mxu0 0
        %1788 = vmatmul.mubr.bf16.gmra.mrb[0].mxu0 %v1753
        %v1789 = vpop.f32.mrb[0].mxu0
        %v1790 = vadd.f32 %v1738, %v1789
        %v1791 = vpop.f32.mrb[0].mxu0
        %v1792 = vpop.f32.mrb[0].mxu0
        %v1793 = vadd.f32 %v1738, %v1792
        %v1794 = vpop.f32.mrb[0].mxu0
        %1795 = vdwg.mxu0
        %v1796 = vmul.f32 %v1790, 0.5
        %v1797 = vmul.f32 %v1793, 0.5
        %v1798 = vmul.f32 %v1790, 0.70710677
        %v1799 = vmul.f32 %v1793, 0.70710677
        %v1800 = verf.f32.pop %v1798
        %v1801 = verf.f32.pop %v1799
        %v1802 = vadd.f32 %v1800, 1.0
        %v1803 = vadd.f32 %v1801, 1.0
        %v1804 = vmul.f32 %v1796, %v1802
        %v1805 = vmul.f32 %v1797, %v1803
        %v1806 = vpack.c.bf16 %v1805, %v1804
        %v1807 = vld [vmem:[%s535] sm:$0xf]
        %v1808 = vld [vmem:[%s535 + $0x4] sm:$0xf]
        %v1809 = vld [vmem:[%s535 + $0x8] sm:$0xf]
        %v1810 = vld [vmem:[%s535 + $0xc] sm:$0xf]
        %v1811 = vld [vmem:[%s535 + $0x10] sm:$0xf]
        %v1812 = vld [vmem:[%s535 + $0x14] sm:$0xf]
        %v1813 = vld [vmem:[%s535 + $0x18] sm:$0xf]
        %v1814 = vld [vmem:[%s535 + $0x1c] sm:$0xf]
        %v1815 = vlaneseq
        %v1816 = vshrl.u32 %v1815, 7
        %v1817 = vsub.s32 5, %v1816
        %v1818 = vrot.slane %v597, %v1817
        %v1827 = vunpack.c.l.b16 %v1807
        %v1828 = vunpack.c.l.b16 %v1808
        %v1829 = vunpack.c.l.b16 %v1809
        %v1830 = vunpack.c.l.b16 %v1810
        %v1831 = vunpack.c.l.b16 %v1811
        %v1832 = vunpack.c.l.b16 %v1812
        %v1833 = vunpack.c.l.b16 %v1813
        %v1834 = vunpack.c.l.b16 %v1814
        %v1835 = vpack.c.b16 %v1828, %v1827
        %v1836 = vpack.c.b16 %v1830, %v1829
        %v1837 = vpack.c.b16 %v1832, %v1831
        %v1838 = vpack.c.b16 %v1834, %v1833
        %vm1843 = vcmask 523264
        %v1845 = vsel %vm1843, %v1806, 0
        %1847 = vmatprep.subr.bf16.mxu0 0
        %1848 = vmatpush1.bf16.msra.mxu0 %v1835
        %1849 = vmatprep.subr.bf16.mxu0 0
        %1850 = vmatpush1.bf16.msra.mxu0 %v1836
        %1851 = vmatprep.subr.bf16.mxu0 0
        %1852 = vmatpush1.bf16.msra.mxu0 %v1837
        %1853 = vmatprep.subr.bf16.mxu0 0
        %1854 = vmatpush1.bf16.msra.mxu0 %v1838
        %1855 = vmatprep.subr.bf16.mxu0 0
        %1856 = vmatpush1.bf16.msra.mxu0 0
        %1857 = vmatprep.subr.bf16.mxu0 0
        %1858 = vmatpush1.bf16.msra.mxu0 0
        %1859 = vmatprep.subr.bf16.mxu0 0
        %1860 = vmatpush1.bf16.msra.mxu0 0
        %1861 = vmatprep.subr.bf16.mxu0 0
        %1862 = vmatpush1.bf16.msra.mxu0 0
        %1863 = vmatprep.subr.bf16.mxu0 0
        %1864 = vmatpush1.bf16.msra.mxu0 0
        %1865 = vmatprep.subr.bf16.mxu0 0
        %1866 = vmatpush1.bf16.msra.mxu0 0
        %1867 = vmatprep.subr.bf16.mxu0 0
        %1868 = vmatpush1.bf16.msra.mxu0 0
        %1869 = vmatprep.subr.bf16.mxu0 0
        %1870 = vmatpush1.bf16.msra.mxu0 0
        %1871 = vmatprep.subr.bf16.mxu0 0
        %1872 = vmatpush1.bf16.msra.mxu0 0
        %1873 = vmatprep.subr.bf16.mxu0 0
        %1874 = vmatpush1.bf16.msra.mxu0 0
        %1875 = vmatprep.subr.bf16.mxu0 0
        %1876 = vmatpush1.bf16.msra.mxu0 0
        %1877 = vmatprep.subr.bf16.mxu0 0
        %1878 = vmatpush1.bf16.msra.mxu0 0
        %1879 = vmatprep.mubr.bf16.mxu0 0
        %1880 = vmatmul.mubr.bf16.gmra.mrb[0].mxu0 %v1845
        %v1881 = vpop.f32.mrb[0].mxu0
        %v1882 = vadd.f32 %v1818, %v1881
        %v1883 = vpop.f32.mrb[0].mxu0
        %v1884 = vpop.f32.mrb[0].mxu0
        %v1885 = vadd.f32 %v1818, %v1884
        %v1886 = vpop.f32.mrb[0].mxu0
        %1887 = vdwg.mxu0
        %v1888 = vadd.f32 %v1688, %v1882
        %v1889 = vadd.f32 %v1689, %v1885
        %1890 = vst.msk [vmem:[#allocation9] sm:$0xff] %vm598, %v1888
        %1891 = vst.msk [vmem:[#allocation9 + $0x8] sm:$0xff] %vm598, %v1889
        // Predicated region
        $region77: #{tpu_custom_call.1} parent=59 // pred_check
          %p1892 = pneg %p306
        $region78: #{tpu_custom_call.1} parent=59 // pred_check_branch
          %1894 = sbr.rel (%p1892) target = $region80
        $region79: #{tpu_custom_call.1} parent=59 // pred_region
          %s1895 = smul.u32 2, %s30
          %s1897 = ssub.s32 256, 256
          %1898 = vsyncadd [#allocation5], %s1897
          %s1899 = smul.addr %s1895, 128
          %s1900 = scalar_lea.hbm %s10, %s1899
          %s1901 = sshll.u32 [#allocation9], 4
          %s1902 = int_to_ptr.vmem [resolvable:$true] %s1901
          %1907 = dma.vmem_to_hbm [thread:$0]  %s1902, 256, %s1900, [#allocation5], 128, 128, 8
        $region80: #{tpu_custom_call.1} parent=59 // pred_fallthru
          _
        // Predicated region
        $region81: #{tpu_custom_call.1} parent=59 // pred_check
          %p1908 = pneg %p306
        $region82: #{tpu_custom_call.1} parent=59 // pred_check_branch
          %1910 = sbr.rel (%p1908) target = $region84
        $region83: #{tpu_custom_call.1} parent=59 // pred_region
          %1911 = dma.done [#allocation5], 256
        $region84: #{tpu_custom_call.1} parent=59 // pred_fallthru
          _
      $region60: #{tpu_custom_call.1} parent=5 // pred_fallthru
        _
      %p1912 = scmp.le.s32.totalorder 2, %s21
      // Predicated region
      $region85: #{tpu_custom_call.1} parent=5 // pred_check
        %p1913 = pneg %p1912
      $region86: #{tpu_custom_call.1} parent=5 // pred_check_branch
        %1915 = sbr.rel (%p1913) target = $region88
      $region87: #{tpu_custom_call.1} parent=5 // pred_region
        %s1916 = ssub.s32 %s21, 2
      $region88: #{tpu_custom_call.1} parent=5 // pred_fallthru
        _
    $region6: #{tpu_custom_call.1} parent=1 // loop_footer
      %s25 = sadd.s32 1, %s21
    $region7: #{tpu_custom_call.1} parent=1 // loop_footer_branch
      %20 = sbr.rel target = $region3
    $region8: #{tpu_custom_call.1} parent=1 // loop_exit
      _
    %1917 = vsyncpa [#allocation4], 1
    %s1918 = scalar_lea.sflag [#allocation4], 1
    %1919 = vsyncpa %s1918, 1
    %1920 = vsyncpa [#allocation7], 1
    %s1921 = scalar_lea.sflag [#allocation7], 1
    %1922 = vsyncpa %s1921, 1
    %1923 = vsyncpa [#allocation5], 1
    %s1924 = scalar_lea.sflag [#allocation5], 1
    %1925 = vsyncpa %s1924, 1

</llo_original>
